<compile_context>
chip_gen: v5e
topology: v5e:2x2
jax: 0.10.0
libtpu: 0.0.40
codegen_flags: <defaults>
</compile_context>

<pallas_src>
import functools

import jax
import jax.numpy as jnp
import numpy as np
from jax.experimental import pallas as pl
from jax.experimental.pallas import tpu as pltpu


def _round_up(x, m):
    return (x + m - 1) // m * m


def _gru_chunk_kernel(lens_ref, gi_ref, whh_ref, bhhn_ref,
                      out_ref, states_ref, h_ref, *, hidden_pad, chunk):
    """One grid step = one (batch block, time chunk).

    Grid: (num_batch_blocks ["parallel"], num_time_chunks ["arbitrary"]).
      lens_ref:   (Bc, 1)   int32 valid lengths
      gi_ref:     (Tc, Bc, 3*Hp) precomputed x @ W_ih^T + folded biases
      whh_ref:    (Hp, 3*Hp) recurrent weights (transposed, gate-padded)
      bhhn_ref:   (1, Hp)   b_hh of the n gate (cannot be folded: r * (.))
      out_ref:    (Tc, Bc, Hp) per-step outputs (time-major)
      states_ref: (Bc, Hp)  final hidden state (resident across time axis)
      h_ref:      (Bc, Hp)  VMEM scratch: running hidden state
    """
    c = pl.program_id(1)
    Hp = hidden_pad

    @pl.when(c == 0)
    def _():
        h_ref[...] = jnp.zeros_like(h_ref)

    lens = lens_ref[...]                     # (Bc, 1) int32
    whh = whh_ref[...]                       # (Hp, 3Hp)
    bhhn = bhhn_ref[...]                     # (1, Hp)

    h = h_ref[...]                           # (Bc, Hp) f32
    for step in range(chunk):                # fully unrolled static loop
        t = c * chunk + step                 # global timestep (traced scalar)
        gi = gi_ref[step]                    # (Bc, 3Hp) dense aligned load
        gh = jnp.dot(h, whh, preferred_element_type=jnp.float32)   # (Bc, 3Hp)
        r = jax.nn.sigmoid(gi[:, 0:Hp] + gh[:, 0:Hp])
        z = jax.nn.sigmoid(gi[:, Hp:2 * Hp] + gh[:, Hp:2 * Hp])
        n = jnp.tanh(gi[:, 2 * Hp:3 * Hp] + r * (gh[:, 2 * Hp:3 * Hp] + bhhn))
        h_new = (1.0 - z) * n + z * h
        valid = lens > t                     # (Bc, 1) bool
        h = jnp.where(valid, h_new, h)       # hidden advances only if valid
        out_ref[step] = jnp.where(valid, h_new, 0.0).astype(out_ref.dtype)
    h_ref[...] = h

    @pl.when(c == pl.num_programs(1) - 1)
    def _():
        # h only advances on valid timesteps, so the final h IS the hidden state
        # at each sequence's last valid timestep (== states[-1] in PyTorch).
        states_ref[...] = h_ref[...].astype(states_ref.dtype)


def gru_encoder_forward(inputs, inputs_len, params, *, time_chunk=8):
    """Pallas GRU encoder.

    inputs:     (B, T, D) float32, batch_first (PyTorch layout)
    inputs_len: (B,) int32 valid lengths (all >= 1)
    params:     dict with w_ih (3H, D), w_hh (3H, H), b_ih (3H,), b_hh (3H,)
    returns (outputs, states): (B, T_out, H), (B, H), T_out = max(inputs_len)
    """
    B, T, D = inputs.shape
    H = params["w_hh"].shape[1]
    f32 = jnp.float32

    Hp = _round_up(H, 128)                   # lane-align gate slices
    Bc = min(_round_up(B, 8), 128)           # sublane-aligned batch tile
    Bp = _round_up(B, Bc)
    Tc = time_chunk
    Tp = _round_up(T, Tc)
    nb = Bp // Bc
    nc = Tp // Tc

    # ---- pack weights/biases into transposed, gate-padded layout ------------
    def pack_gate_cols(w):                   # w: (3H, X) -> (X, 3Hp)
        X = w.shape[1]
        out = jnp.zeros((X, 3 * Hp), f32)
        for g in range(3):
            out = out.at[:, g * Hp:g * Hp + H].set(
                jnp.transpose(w[g * H:(g + 1) * H, :]).astype(f32))
        return out

    wih_t = pack_gate_cols(params["w_ih"])                           # (D, 3Hp)
    whh_t = jnp.zeros((Hp, 3 * Hp), f32).at[:H, :].set(
        pack_gate_cols(params["w_hh"]))                              # (Hp, 3Hp)

    b_ih = params["b_ih"].astype(f32)
    b_hh = params["b_hh"].astype(f32)
    bias_gi = jnp.zeros((3 * Hp,), f32)
    bias_gi = bias_gi.at[0:H].set(b_ih[0:H] + b_hh[0:H])                  # r
    bias_gi = bias_gi.at[Hp:Hp + H].set(b_ih[H:2 * H] + b_hh[H:2 * H])    # z
    bias_gi = bias_gi.at[2 * Hp:2 * Hp + H].set(b_ih[2 * H:3 * H])        # n
    bhh_n = jnp.zeros((1, Hp), f32).at[0, :H].set(b_hh[2 * H:3 * H])

    # ---- hoisted input projection: one batched MXU matmul over all steps ----
    x_pad = jnp.zeros((Bp, Tp, D), f32).at[:B, :T, :].set(inputs.astype(f32))
    gi = jnp.einsum("btd,dg->tbg", x_pad, wih_t,
                    preferred_element_type=jnp.float32) + bias_gi    # (Tp,Bp,3Hp)

    lens = jnp.zeros((Bp, 1), jnp.int32).at[:B, 0].set(
        inputs_len.astype(jnp.int32))

    kernel = functools.partial(_gru_chunk_kernel, hidden_pad=Hp, chunk=Tc)

    out_tbh, states = pl.pallas_call(
        kernel,
        out_shape=(
            jax.ShapeDtypeStruct((Tp, Bp, Hp), f32),
            jax.ShapeDtypeStruct((Bp, Hp), f32),
        ),
        grid_spec=pltpu.PrefetchScalarGridSpec(
            num_scalar_prefetch=0,
            grid=(nb, nc),
            in_specs=[
                pl.BlockSpec((Bc, 1), lambda b, c: (b, 0)),               # lens
                pl.BlockSpec((Tc, Bc, 3 * Hp), lambda b, c: (c, b, 0)),   # gi
                pl.BlockSpec((Hp, 3 * Hp), lambda b, c: (0, 0)),          # W_hh^T
                pl.BlockSpec((1, Hp), lambda b, c: (0, 0)),               # b_hh_n
            ],
            out_specs=[
                pl.BlockSpec((Tc, Bc, Hp), lambda b, c: (c, b, 0)),       # outputs
                pl.BlockSpec((Bc, Hp), lambda b, c: (b, 0)),              # states
            ],
            scratch_shapes=[pltpu.VMEM((Bc, Hp), f32)],                   # running h
        ),
        compiler_params=pltpu.CompilerParams(
            dimension_semantics=("parallel", "arbitrary")),
    )(lens, gi, whh_t, bhh_n)

    outputs = jnp.transpose(out_tbh, (1, 0, 2))[:B, :, :H]    # (B, Tp, H)
    # pad_packed_sequence pads only up to max(inputs_len).
    # TODO(synk): host sync here keeps PyTorch semantics but is not jittable.
    t_out = int(np.max(np.asarray(inputs_len)))
    return outputs[:, :t_out, :], states[:B, :H]


def gru_encoder_reference(inputs, inputs_len, params):
    """Pure-JAX reference matching torch.nn.GRU + pack/pad semantics."""
    B, T, D = inputs.shape
    H = params["w_hh"].shape[1]
    w_ih_t = jnp.transpose(params["w_ih"])
    w_hh_t = jnp.transpose(params["w_hh"])
    b_ih = params["b_ih"]
    b_hh = params["b_hh"]
    lens = inputs_len.astype(jnp.int32)

    def step(carry, xt_t):
        h_prev, states = carry
        x_t, t = xt_t
        gi = x_t @ w_ih_t + b_ih
        gh = h_prev @ w_hh_t + b_hh
        r = jax.nn.sigmoid(gi[:, :H] + gh[:, :H])
        z = jax.nn.sigmoid(gi[:, H:2 * H] + gh[:, H:2 * H])
        n = jnp.tanh(gi[:, 2 * H:] + r * gh[:, 2 * H:])
        h_new = (1.0 - z) * n + z * h_prev
        mask = (lens > t)[:, None]
        h = jnp.where(mask, h_new, h_prev)
        out_t = jnp.where(mask, h_new, 0.0)
        states = jnp.where(mask, h_new, states)
        return (h, states), out_t

    init = (jnp.zeros((B, H), jnp.float32), jnp.zeros((B, H), jnp.float32))
    (_, states), outs = jax.lax.scan(
        step, init, (jnp.transpose(inputs, (1, 0, 2)), jnp.arange(T)))
    outputs = jnp.transpose(outs, (1, 0, 2))
    t_out = int(np.max(np.asarray(inputs_len)))
    return outputs[:, :t_out, :], states


if __name__ == "__main__":
    # Small shapes consistent with the module: batch=2, seq=8, input=16, hidden=32.
    B, T, D, H = 2, 8, 16, 32

    key = jax.random.PRNGKey(0)
    k_x, k_wih, k_whh, k_bih, k_bhh = jax.random.split(key, 5)

    scale = 1.0 / jnp.sqrt(jnp.float32(H))   # torch.nn.GRU init range
    params = {
        "w_ih": jax.random.uniform(k_wih, (3 * H, D), jnp.float32, -scale, scale),
        "w_hh": jax.random.uniform(k_whh, (3 * H, H), jnp.float32, -scale, scale),
        "b_ih": jax.random.uniform(k_bih, (3 * H,), jnp.float32, -scale, scale),
        "b_hh": jax.random.uniform(k_bhh, (3 * H,), jnp.float32, -scale, scale),
    }

    inputs = jax.random.normal(k_x, (B, T, D), jnp.float32)
    inputs_len = jnp.array([T, 5], dtype=jnp.int32)   # max len == T

    outputs, states = gru_encoder_forward(inputs, inputs_len, params)
    outputs = jax.block_until_ready(outputs)
    states = jax.block_until_ready(states)

    ref_out, ref_states = gru_encoder_reference(inputs, inputs_len, params)
    np.testing.assert_allclose(np.asarray(outputs), np.asarray(ref_out),
                               rtol=1e-5, atol=1e-5)
    np.testing.assert_allclose(np.asarray(states), np.asarray(ref_states),
                               rtol=1e-5, atol=1e-5)

    print("KERNEL_OK")
</pallas_src>

<mosaic_0001>
module attributes {stable_mosaic.version = 11 : i64} {
  func.func @_gru_chunk_kernel(%arg0: i32, %arg1: i32, %arg2: memref<8x1xi32, #tpu.memory_space<vmem>>, %arg3: memref<8x8x384xf32, #tpu.memory_space<vmem>>, %arg4: memref<128x384xf32, #tpu.memory_space<vmem>>, %arg5: memref<1x128xf32, #tpu.memory_space<vmem>>, %arg6: memref<8x8x128xf32, #tpu.memory_space<vmem>>, %arg7: memref<8x128xf32, #tpu.memory_space<vmem>>, %arg8: memref<8x128xf32, #tpu.memory_space<vmem>>) attributes {dimension_semantics = [#tpu.dimension_semantics<parallel>, #tpu.dimension_semantics<arbitrary>], iteration_bounds = array<i64: 1, 1>, scalar_prefetch = 0 : i64, scratch_operands = 1 : i64, tpu.core_type = #tpu.core_type<tc>, window_params = [{transform_indices = @transform_0, window_bounds = array<i64: 8, 1>}, {transform_indices = @transform_1, window_bounds = array<i64: 8, 8, 384>}, {pipeline_mode = #tpu.pipeline_mode<synchronous>, transform_indices = @transform_2, window_bounds = array<i64: 128, 384>}, {pipeline_mode = #tpu.pipeline_mode<synchronous>, transform_indices = @transform_3, window_bounds = array<i64: 1, 128>}, {transform_indices = @transform_4, window_bounds = array<i64: 8, 8, 128>}, {transform_indices = @transform_5, window_bounds = array<i64: 8, 128>}]} {
    %c0_i32 = arith.constant 0 : i32
    %0 = arith.cmpi eq, %arg1, %c0_i32 : i32
    %1 = arith.extui %0 : i1 to i32
    %c0_i32_0 = arith.constant 0 : i32
    %2 = arith.cmpi ne, %1, %c0_i32_0 : i32
    scf.if %2 {
      %cst_100 = arith.constant 0.000000e+00 : f32
      %371 = vector.broadcast %cst_100 : f32 to vector<8x128xf32>
      %c0_101 = arith.constant 0 : index
      %c0_102 = arith.constant 0 : index
      %372 = vector.load %arg8[%c0_101, %c0_102] : memref<8x128xf32, #tpu.memory_space<vmem>>, vector<8x128xf32>
      tpu.vector_store %arg8[%c0_101, %c0_102], %371 {strides = array<i32>} : memref<8x128xf32, #tpu.memory_space<vmem>>, vector<8x128xf32>,
    } else {
    }
    %c0 = arith.constant 0 : index
    %c0_1 = arith.constant 0 : index
    %3 = vector.load %arg2[%c0, %c0_1] : memref<8x1xi32, #tpu.memory_space<vmem>>, vector<8x1xi32>
    %c0_2 = arith.constant 0 : index
    %c0_3 = arith.constant 0 : index
    %4 = vector.load %arg4[%c0_2, %c0_3] : memref<128x384xf32, #tpu.memory_space<vmem>>, vector<128x384xf32>
    %c0_4 = arith.constant 0 : index
    %c0_5 = arith.constant 0 : index
    %5 = vector.load %arg5[%c0_4, %c0_5] : memref<1x128xf32, #tpu.memory_space<vmem>>, vector<1x128xf32>
    %c0_6 = arith.constant 0 : index
    %c0_7 = arith.constant 0 : index
    %6 = vector.load %arg8[%c0_6, %c0_7] : memref<8x128xf32, #tpu.memory_space<vmem>>, vector<8x128xf32>
    %c8_i32 = arith.constant 8 : i32
    %7 = arith.muli %arg1, %c8_i32 : i32
    %c0_i32_8 = arith.constant 0 : i32
    %8 = arith.addi %7, %c0_i32_8 : i32
    %c0_9 = arith.constant 0 : index
    %c0_10 = arith.constant 0 : index
    %c0_11 = arith.constant 0 : index
    %9 = vector.load %arg3[%c0_9, %c0_10, %c0_11] : memref<8x8x384xf32, #tpu.memory_space<vmem>>, vector<1x8x384xf32>
    %10 = vector.shape_cast %9 : vector<1x8x384xf32> to vector<8x384xf32>
    %cst = arith.constant dense<0.000000e+00> : vector<8x384xf32>
    %11 = tpu.matmul %6, %4, %cst {dimension_numbers = #tpu.dot_dimension_numbers<[1], [0], [0], [1], [0, 0, 1, 1], [], []>} : vector<8x128xf32>, vector<128x384xf32>, vector<8x384xf32> -> vector<8x384xf32>
    %12 = vector.extract_strided_slice %10 {offsets = [0, 0], sizes = [8, 128], strides = [1, 1]} : vector<8x384xf32> to vector<8x128xf32>
    %13 = vector.extract_strided_slice %11 {offsets = [0, 0], sizes = [8, 128], strides = [1, 1]} : vector<8x384xf32> to vector<8x128xf32>
    %14 = arith.addf %12, %13 : vector<8x128xf32>
    %15 = arith.negf %14 : vector<8x128xf32>
    %16 = math.exp %15 : vector<8x128xf32>
    %cst_12 = arith.constant 1.000000e+00 : f32
    %17 = vector.broadcast %cst_12 : f32 to vector<8x128xf32>
    %18 = arith.addf %17, %16 : vector<8x128xf32>
    %19 = arith.divf %17, %18 : vector<8x128xf32>
    %20 = vector.extract_strided_slice %10 {offsets = [0, 128], sizes = [8, 128], strides = [1, 1]} : vector<8x384xf32> to vector<8x128xf32>
    %21 = vector.extract_strided_slice %11 {offsets = [0, 128], sizes = [8, 128], strides = [1, 1]} : vector<8x384xf32> to vector<8x128xf32>
    %22 = arith.addf %20, %21 : vector<8x128xf32>
    %23 = arith.negf %22 : vector<8x128xf32>
    %24 = math.exp %23 : vector<8x128xf32>
    %cst_13 = arith.constant 1.000000e+00 : f32
    %25 = vector.broadcast %cst_13 : f32 to vector<8x128xf32>
    %26 = arith.addf %25, %24 : vector<8x128xf32>
    %27 = arith.divf %25, %26 : vector<8x128xf32>
    %28 = vector.extract_strided_slice %10 {offsets = [0, 256], sizes = [8, 128], strides = [1, 1]} : vector<8x384xf32> to vector<8x128xf32>
    %29 = vector.extract_strided_slice %11 {offsets = [0, 256], sizes = [8, 128], strides = [1, 1]} : vector<8x384xf32> to vector<8x128xf32>
    %30 = vector.broadcast %5 : vector<1x128xf32> to vector<8x128xf32>
    %31 = arith.addf %29, %30 : vector<8x128xf32>
    %32 = arith.mulf %19, %31 : vector<8x128xf32>
    %33 = arith.addf %28, %32 : vector<8x128xf32>
    %34 = math.tanh %33 : vector<8x128xf32>
    %cst_14 = arith.constant 1.000000e+00 : f32
    %35 = vector.broadcast %cst_14 : f32 to vector<8x128xf32>
    %36 = arith.subf %35, %27 : vector<8x128xf32>
    %37 = arith.mulf %36, %34 : vector<8x128xf32>
    %38 = arith.mulf %27, %6 : vector<8x128xf32>
    %39 = arith.addf %37, %38 : vector<8x128xf32>
    %40 = vector.broadcast %8 : i32 to vector<8x1xi32>
    %41 = arith.cmpi sgt, %3, %40 : vector<8x1xi32>
    %42 = vector.shape_cast %41 : vector<8x1xi1> to vector<8x1xi1>
    %43 = vector.broadcast %42 : vector<8x1xi1> to vector<8x128xi1>
    %44 = arith.select %43, %39, %6 : vector<8x128xi1>, vector<8x128xf32>
    %cst_15 = arith.constant 0.000000e+00 : f32
    %45 = vector.shape_cast %41 : vector<8x1xi1> to vector<8x1xi1>
    %46 = vector.broadcast %45 : vector<8x1xi1> to vector<8x128xi1>
    %47 = vector.broadcast %cst_15 : f32 to vector<8x128xf32>
    %48 = arith.select %46, %39, %47 : vector<8x128xi1>, vector<8x128xf32>
    %c0_16 = arith.constant 0 : index
    %c0_17 = arith.constant 0 : index
    %c0_18 = arith.constant 0 : index
    %49 = vector.load %arg6[%c0_16, %c0_17, %c0_18] : memref<8x8x128xf32, #tpu.memory_space<vmem>>, vector<1x8x128xf32>
    %50 = vector.shape_cast %49 : vector<1x8x128xf32> to vector<8x128xf32>
    %51 = vector.shape_cast %48 : vector<8x128xf32> to vector<1x8x128xf32>
    tpu.vector_store %arg6[%c0_16, %c0_17, %c0_18], %51 {strides = array<i32>} : memref<8x8x128xf32, #tpu.memory_space<vmem>>, vector<1x8x128xf32>,
    %c8_i32_19 = arith.constant 8 : i32
    %52 = arith.muli %arg1, %c8_i32_19 : i32
    %c1_i32 = arith.constant 1 : i32
    %53 = arith.addi %52, %c1_i32 : i32
    %c1 = arith.constant 1 : index
    %c0_20 = arith.constant 0 : index
    %c0_21 = arith.constant 0 : index
    %54 = vector.load %arg3[%c1, %c0_20, %c0_21] : memref<8x8x384xf32, #tpu.memory_space<vmem>>, vector<1x8x384xf32>
    %55 = vector.shape_cast %54 : vector<1x8x384xf32> to vector<8x384xf32>
    %cst_22 = arith.constant dense<0.000000e+00> : vector<8x384xf32>
    %56 = tpu.matmul %44, %4, %cst_22 {dimension_numbers = #tpu.dot_dimension_numbers<[1], [0], [0], [1], [0, 0, 1, 1], [], []>} : vector<8x128xf32>, vector<128x384xf32>, vector<8x384xf32> -> vector<8x384xf32>
    %57 = vector.extract_strided_slice %55 {offsets = [0, 0], sizes = [8, 128], strides = [1, 1]} : vector<8x384xf32> to vector<8x128xf32>
    %58 = vector.extract_strided_slice %56 {offsets = [0, 0], sizes = [8, 128], strides = [1, 1]} : vector<8x384xf32> to vector<8x128xf32>
    %59 = arith.addf %57, %58 : vector<8x128xf32>
    %60 = arith.negf %59 : vector<8x128xf32>
    %61 = math.exp %60 : vector<8x128xf32>
    %cst_23 = arith.constant 1.000000e+00 : f32
    %62 = vector.broadcast %cst_23 : f32 to vector<8x128xf32>
    %63 = arith.addf %62, %61 : vector<8x128xf32>
    %64 = arith.divf %62, %63 : vector<8x128xf32>
    %65 = vector.extract_strided_slice %55 {offsets = [0, 128], sizes = [8, 128], strides = [1, 1]} : vector<8x384xf32> to vector<8x128xf32>
    %66 = vector.extract_strided_slice %56 {offsets = [0, 128], sizes = [8, 128], strides = [1, 1]} : vector<8x384xf32> to vector<8x128xf32>
    %67 = arith.addf %65, %66 : vector<8x128xf32>
    %68 = arith.negf %67 : vector<8x128xf32>
    %69 = math.exp %68 : vector<8x128xf32>
    %cst_24 = arith.constant 1.000000e+00 : f32
    %70 = vector.broadcast %cst_24 : f32 to vector<8x128xf32>
    %71 = arith.addf %70, %69 : vector<8x128xf32>
    %72 = arith.divf %70, %71 : vector<8x128xf32>
    %73 = vector.extract_strided_slice %55 {offsets = [0, 256], sizes = [8, 128], strides = [1, 1]} : vector<8x384xf32> to vector<8x128xf32>
    %74 = vector.extract_strided_slice %56 {offsets = [0, 256], sizes = [8, 128], strides = [1, 1]} : vector<8x384xf32> to vector<8x128xf32>
    %75 = vector.broadcast %5 : vector<1x128xf32> to vector<8x128xf32>
    %76 = arith.addf %74, %75 : vector<8x128xf32>
    %77 = arith.mulf %64, %76 : vector<8x128xf32>
    %78 = arith.addf %73, %77 : vector<8x128xf32>
    %79 = math.tanh %78 : vector<8x128xf32>
    %cst_25 = arith.constant 1.000000e+00 : f32
    %80 = vector.broadcast %cst_25 : f32 to vector<8x128xf32>
    %81 = arith.subf %80, %72 : vector<8x128xf32>
    %82 = arith.mulf %81, %79 : vector<8x128xf32>
    %83 = arith.mulf %72, %44 : vector<8x128xf32>
    %84 = arith.addf %82, %83 : vector<8x128xf32>
    %85 = vector.broadcast %53 : i32 to vector<8x1xi32>
    %86 = arith.cmpi sgt, %3, %85 : vector<8x1xi32>
    %87 = vector.shape_cast %86 : vector<8x1xi1> to vector<8x1xi1>
    %88 = vector.broadcast %87 : vector<8x1xi1> to vector<8x128xi1>
    %89 = arith.select %88, %84, %44 : vector<8x128xi1>, vector<8x128xf32>
    %cst_26 = arith.constant 0.000000e+00 : f32
    %90 = vector.shape_cast %86 : vector<8x1xi1> to vector<8x1xi1>
    %91 = vector.broadcast %90 : vector<8x1xi1> to vector<8x128xi1>
    %92 = vector.broadcast %cst_26 : f32 to vector<8x128xf32>
    %93 = arith.select %91, %84, %92 : vector<8x128xi1>, vector<8x128xf32>
    %c1_27 = arith.constant 1 : index
    %c0_28 = arith.constant 0 : index
    %c0_29 = arith.constant 0 : index
    %94 = vector.load %arg6[%c1_27, %c0_28, %c0_29] : memref<8x8x128xf32, #tpu.memory_space<vmem>>, vector<1x8x128xf32>
    %95 = vector.shape_cast %94 : vector<1x8x128xf32> to vector<8x128xf32>
    %96 = vector.shape_cast %93 : vector<8x128xf32> to vector<1x8x128xf32>
    tpu.vector_store %arg6[%c1_27, %c0_28, %c0_29], %96 {strides = array<i32>} : memref<8x8x128xf32, #tpu.memory_space<vmem>>, vector<1x8x128xf32>,
    %c8_i32_30 = arith.constant 8 : i32
    %97 = arith.muli %arg1, %c8_i32_30 : i32
    %c2_i32 = arith.constant 2 : i32
    %98 = arith.addi %97, %c2_i32 : i32
    %c2 = arith.constant 2 : index
    %c0_31 = arith.constant 0 : index
    %c0_32 = arith.constant 0 : index
    %99 = vector.load %arg3[%c2, %c0_31, %c0_32] : memref<8x8x384xf32, #tpu.memory_space<vmem>>, vector<1x8x384xf32>
    %100 = vector.shape_cast %99 : vector<1x8x384xf32> to vector<8x384xf32>
    %cst_33 = arith.constant dense<0.000000e+00> : vector<8x384xf32>
    %101 = tpu.matmul %89, %4, %cst_33 {dimension_numbers = #tpu.dot_dimension_numbers<[1], [0], [0], [1], [0, 0, 1, 1], [], []>} : vector<8x128xf32>, vector<128x384xf32>, vector<8x384xf32> -> vector<8x384xf32>
    %102 = vector.extract_strided_slice %100 {offsets = [0, 0], sizes = [8, 128], strides = [1, 1]} : vector<8x384xf32> to vector<8x128xf32>
    %103 = vector.extract_strided_slice %101 {offsets = [0, 0], sizes = [8, 128], strides = [1, 1]} : vector<8x384xf32> to vector<8x128xf32>
    %104 = arith.addf %102, %103 : vector<8x128xf32>
    %105 = arith.negf %104 : vector<8x128xf32>
    %106 = math.exp %105 : vector<8x128xf32>
    %cst_34 = arith.constant 1.000000e+00 : f32
    %107 = vector.broadcast %cst_34 : f32 to vector<8x128xf32>
    %108 = arith.addf %107, %106 : vector<8x128xf32>
    %109 = arith.divf %107, %108 : vector<8x128xf32>
    %110 = vector.extract_strided_slice %100 {offsets = [0, 128], sizes = [8, 128], strides = [1, 1]} : vector<8x384xf32> to vector<8x128xf32>
    %111 = vector.extract_strided_slice %101 {offsets = [0, 128], sizes = [8, 128], strides = [1, 1]} : vector<8x384xf32> to vector<8x128xf32>
    %112 = arith.addf %110, %111 : vector<8x128xf32>
    %113 = arith.negf %112 : vector<8x128xf32>
    %114 = math.exp %113 : vector<8x128xf32>
    %cst_35 = arith.constant 1.000000e+00 : f32
    %115 = vector.broadcast %cst_35 : f32 to vector<8x128xf32>
    %116 = arith.addf %115, %114 : vector<8x128xf32>
    %117 = arith.divf %115, %116 : vector<8x128xf32>
    %118 = vector.extract_strided_slice %100 {offsets = [0, 256], sizes = [8, 128], strides = [1, 1]} : vector<8x384xf32> to vector<8x128xf32>
    %119 = vector.extract_strided_slice %101 {offsets = [0, 256], sizes = [8, 128], strides = [1, 1]} : vector<8x384xf32> to vector<8x128xf32>
    %120 = vector.broadcast %5 : vector<1x128xf32> to vector<8x128xf32>
    %121 = arith.addf %119, %120 : vector<8x128xf32>
    %122 = arith.mulf %109, %121 : vector<8x128xf32>
    %123 = arith.addf %118, %122 : vector<8x128xf32>
    %124 = math.tanh %123 : vector<8x128xf32>
    %cst_36 = arith.constant 1.000000e+00 : f32
    %125 = vector.broadcast %cst_36 : f32 to vector<8x128xf32>
    %126 = arith.subf %125, %117 : vector<8x128xf32>
    %127 = arith.mulf %126, %124 : vector<8x128xf32>
    %128 = arith.mulf %117, %89 : vector<8x128xf32>
    %129 = arith.addf %127, %128 : vector<8x128xf32>
    %130 = vector.broadcast %98 : i32 to vector<8x1xi32>
    %131 = arith.cmpi sgt, %3, %130 : vector<8x1xi32>
    %132 = vector.shape_cast %131 : vector<8x1xi1> to vector<8x1xi1>
    %133 = vector.broadcast %132 : vector<8x1xi1> to vector<8x128xi1>
    %134 = arith.select %133, %129, %89 : vector<8x128xi1>, vector<8x128xf32>
    %cst_37 = arith.constant 0.000000e+00 : f32
    %135 = vector.shape_cast %131 : vector<8x1xi1> to vector<8x1xi1>
    %136 = vector.broadcast %135 : vector<8x1xi1> to vector<8x128xi1>
    %137 = vector.broadcast %cst_37 : f32 to vector<8x128xf32>
    %138 = arith.select %136, %129, %137 : vector<8x128xi1>, vector<8x128xf32>
    %c2_38 = arith.constant 2 : index
    %c0_39 = arith.constant 0 : index
    %c0_40 = arith.constant 0 : index
    %139 = vector.load %arg6[%c2_38, %c0_39, %c0_40] : memref<8x8x128xf32, #tpu.memory_space<vmem>>, vector<1x8x128xf32>
    %140 = vector.shape_cast %139 : vector<1x8x128xf32> to vector<8x128xf32>
    %141 = vector.shape_cast %138 : vector<8x128xf32> to vector<1x8x128xf32>
    tpu.vector_store %arg6[%c2_38, %c0_39, %c0_40], %141 {strides = array<i32>} : memref<8x8x128xf32, #tpu.memory_space<vmem>>, vector<1x8x128xf32>,
    %c8_i32_41 = arith.constant 8 : i32
    %142 = arith.muli %arg1, %c8_i32_41 : i32
    %c3_i32 = arith.constant 3 : i32
    %143 = arith.addi %142, %c3_i32 : i32
    %c3 = arith.constant 3 : index
    %c0_42 = arith.constant 0 : index
    %c0_43 = arith.constant 0 : index
    %144 = vector.load %arg3[%c3, %c0_42, %c0_43] : memref<8x8x384xf32, #tpu.memory_space<vmem>>, vector<1x8x384xf32>
    %145 = vector.shape_cast %144 : vector<1x8x384xf32> to vector<8x384xf32>
    %cst_44 = arith.constant dense<0.000000e+00> : vector<8x384xf32>
    %146 = tpu.matmul %134, %4, %cst_44 {dimension_numbers = #tpu.dot_dimension_numbers<[1], [0], [0], [1], [0, 0, 1, 1], [], []>} : vector<8x128xf32>, vector<128x384xf32>, vector<8x384xf32> -> vector<8x384xf32>
    %147 = vector.extract_strided_slice %145 {offsets = [0, 0], sizes = [8, 128], strides = [1, 1]} : vector<8x384xf32> to vector<8x128xf32>
    %148 = vector.extract_strided_slice %146 {offsets = [0, 0], sizes = [8, 128], strides = [1, 1]} : vector<8x384xf32> to vector<8x128xf32>
    %149 = arith.addf %147, %148 : vector<8x128xf32>
    %150 = arith.negf %149 : vector<8x128xf32>
    %151 = math.exp %150 : vector<8x128xf32>
    %cst_45 = arith.constant 1.000000e+00 : f32
    %152 = vector.broadcast %cst_45 : f32 to vector<8x128xf32>
    %153 = arith.addf %152, %151 : vector<8x128xf32>
    %154 = arith.divf %152, %153 : vector<8x128xf32>
    %155 = vector.extract_strided_slice %145 {offsets = [0, 128], sizes = [8, 128], strides = [1, 1]} : vector<8x384xf32> to vector<8x128xf32>
    %156 = vector.extract_strided_slice %146 {offsets = [0, 128], sizes = [8, 128], strides = [1, 1]} : vector<8x384xf32> to vector<8x128xf32>
    %157 = arith.addf %155, %156 : vector<8x128xf32>
    %158 = arith.negf %157 : vector<8x128xf32>
    %159 = math.exp %158 : vector<8x128xf32>
    %cst_46 = arith.constant 1.000000e+00 : f32
    %160 = vector.broadcast %cst_46 : f32 to vector<8x128xf32>
    %161 = arith.addf %160, %159 : vector<8x128xf32>
    %162 = arith.divf %160, %161 : vector<8x128xf32>
    %163 = vector.extract_strided_slice %145 {offsets = [0, 256], sizes = [8, 128], strides = [1, 1]} : vector<8x384xf32> to vector<8x128xf32>
    %164 = vector.extract_strided_slice %146 {offsets = [0, 256], sizes = [8, 128], strides = [1, 1]} : vector<8x384xf32> to vector<8x128xf32>
    %165 = vector.broadcast %5 : vector<1x128xf32> to vector<8x128xf32>
    %166 = arith.addf %164, %165 : vector<8x128xf32>
    %167 = arith.mulf %154, %166 : vector<8x128xf32>
    %168 = arith.addf %163, %167 : vector<8x128xf32>
    %169 = math.tanh %168 : vector<8x128xf32>
    %cst_47 = arith.constant 1.000000e+00 : f32
    %170 = vector.broadcast %cst_47 : f32 to vector<8x128xf32>
    %171 = arith.subf %170, %162 : vector<8x128xf32>
    %172 = arith.mulf %171, %169 : vector<8x128xf32>
    %173 = arith.mulf %162, %134 : vector<8x128xf32>
    %174 = arith.addf %172, %173 : vector<8x128xf32>
    %175 = vector.broadcast %143 : i32 to vector<8x1xi32>
    %176 = arith.cmpi sgt, %3, %175 : vector<8x1xi32>
    %177 = vector.shape_cast %176 : vector<8x1xi1> to vector<8x1xi1>
    %178 = vector.broadcast %177 : vector<8x1xi1> to vector<8x128xi1>
    %179 = arith.select %178, %174, %134 : vector<8x128xi1>, vector<8x128xf32>
    %cst_48 = arith.constant 0.000000e+00 : f32
    %180 = vector.shape_cast %176 : vector<8x1xi1> to vector<8x1xi1>
    %181 = vector.broadcast %180 : vector<8x1xi1> to vector<8x128xi1>
    %182 = vector.broadcast %cst_48 : f32 to vector<8x128xf32>
    %183 = arith.select %181, %174, %182 : vector<8x128xi1>, vector<8x128xf32>
    %c3_49 = arith.constant 3 : index
    %c0_50 = arith.constant 0 : index
    %c0_51 = arith.constant 0 : index
    %184 = vector.load %arg6[%c3_49, %c0_50, %c0_51] : memref<8x8x128xf32, #tpu.memory_space<vmem>>, vector<1x8x128xf32>
    %185 = vector.shape_cast %184 : vector<1x8x128xf32> to vector<8x128xf32>
    %186 = vector.shape_cast %183 : vector<8x128xf32> to vector<1x8x128xf32>
    tpu.vector_store %arg6[%c3_49, %c0_50, %c0_51], %186 {strides = array<i32>} : memref<8x8x128xf32, #tpu.memory_space<vmem>>, vector<1x8x128xf32>,
    %c8_i32_52 = arith.constant 8 : i32
    %187 = arith.muli %arg1, %c8_i32_52 : i32
    %c4_i32 = arith.constant 4 : i32
    %188 = arith.addi %187, %c4_i32 : i32
    %c4 = arith.constant 4 : index
    %c0_53 = arith.constant 0 : index
    %c0_54 = arith.constant 0 : index
    %189 = vector.load %arg3[%c4, %c0_53, %c0_54] : memref<8x8x384xf32, #tpu.memory_space<vmem>>, vector<1x8x384xf32>
    %190 = vector.shape_cast %189 : vector<1x8x384xf32> to vector<8x384xf32>
    %cst_55 = arith.constant dense<0.000000e+00> : vector<8x384xf32>
    %191 = tpu.matmul %179, %4, %cst_55 {dimension_numbers = #tpu.dot_dimension_numbers<[1], [0], [0], [1], [0, 0, 1, 1], [], []>} : vector<8x128xf32>, vector<128x384xf32>, vector<8x384xf32> -> vector<8x384xf32>
    %192 = vector.extract_strided_slice %190 {offsets = [0, 0], sizes = [8, 128], strides = [1, 1]} : vector<8x384xf32> to vector<8x128xf32>
    %193 = vector.extract_strided_slice %191 {offsets = [0, 0], sizes = [8, 128], strides = [1, 1]} : vector<8x384xf32> to vector<8x128xf32>
    %194 = arith.addf %192, %193 : vector<8x128xf32>
    %195 = arith.negf %194 : vector<8x128xf32>
    %196 = math.exp %195 : vector<8x128xf32>
    %cst_56 = arith.constant 1.000000e+00 : f32
    %197 = vector.broadcast %cst_56 : f32 to vector<8x128xf32>
    %198 = arith.addf %197, %196 : vector<8x128xf32>
    %199 = arith.divf %197, %198 : vector<8x128xf32>
    %200 = vector.extract_strided_slice %190 {offsets = [0, 128], sizes = [8, 128], strides = [1, 1]} : vector<8x384xf32> to vector<8x128xf32>
    %201 = vector.extract_strided_slice %191 {offsets = [0, 128], sizes = [8, 128], strides = [1, 1]} : vector<8x384xf32> to vector<8x128xf32>
    %202 = arith.addf %200, %201 : vector<8x128xf32>
    %203 = arith.negf %202 : vector<8x128xf32>
    %204 = math.exp %203 : vector<8x128xf32>
    %cst_57 = arith.constant 1.000000e+00 : f32
    %205 = vector.broadcast %cst_57 : f32 to vector<8x128xf32>
    %206 = arith.addf %205, %204 : vector<8x128xf32>
    %207 = arith.divf %205, %206 : vector<8x128xf32>
    %208 = vector.extract_strided_slice %190 {offsets = [0, 256], sizes = [8, 128], strides = [1, 1]} : vector<8x384xf32> to vector<8x128xf32>
    %209 = vector.extract_strided_slice %191 {offsets = [0, 256], sizes = [8, 128], strides = [1, 1]} : vector<8x384xf32> to vector<8x128xf32>
    %210 = vector.broadcast %5 : vector<1x128xf32> to vector<8x128xf32>
    %211 = arith.addf %209, %210 : vector<8x128xf32>
    %212 = arith.mulf %199, %211 : vector<8x128xf32>
    %213 = arith.addf %208, %212 : vector<8x128xf32>
    %214 = math.tanh %213 : vector<8x128xf32>
    %cst_58 = arith.constant 1.000000e+00 : f32
    %215 = vector.broadcast %cst_58 : f32 to vector<8x128xf32>
    %216 = arith.subf %215, %207 : vector<8x128xf32>
    %217 = arith.mulf %216, %214 : vector<8x128xf32>
    %218 = arith.mulf %207, %179 : vector<8x128xf32>
    %219 = arith.addf %217, %218 : vector<8x128xf32>
    %220 = vector.broadcast %188 : i32 to vector<8x1xi32>
    %221 = arith.cmpi sgt, %3, %220 : vector<8x1xi32>
    %222 = vector.shape_cast %221 : vector<8x1xi1> to vector<8x1xi1>
    %223 = vector.broadcast %222 : vector<8x1xi1> to vector<8x128xi1>
    %224 = arith.select %223, %219, %179 : vector<8x128xi1>, vector<8x128xf32>
    %cst_59 = arith.constant 0.000000e+00 : f32
    %225 = vector.shape_cast %221 : vector<8x1xi1> to vector<8x1xi1>
    %226 = vector.broadcast %225 : vector<8x1xi1> to vector<8x128xi1>
    %227 = vector.broadcast %cst_59 : f32 to vector<8x128xf32>
    %228 = arith.select %226, %219, %227 : vector<8x128xi1>, vector<8x128xf32>
    %c4_60 = arith.constant 4 : index
    %c0_61 = arith.constant 0 : index
    %c0_62 = arith.constant 0 : index
    %229 = vector.load %arg6[%c4_60, %c0_61, %c0_62] : memref<8x8x128xf32, #tpu.memory_space<vmem>>, vector<1x8x128xf32>
    %230 = vector.shape_cast %229 : vector<1x8x128xf32> to vector<8x128xf32>
    %231 = vector.shape_cast %228 : vector<8x128xf32> to vector<1x8x128xf32>
    tpu.vector_store %arg6[%c4_60, %c0_61, %c0_62], %231 {strides = array<i32>} : memref<8x8x128xf32, #tpu.memory_space<vmem>>, vector<1x8x128xf32>,
    %c8_i32_63 = arith.constant 8 : i32
    %232 = arith.muli %arg1, %c8_i32_63 : i32
    %c5_i32 = arith.constant 5 : i32
    %233 = arith.addi %232, %c5_i32 : i32
    %c5 = arith.constant 5 : index
    %c0_64 = arith.constant 0 : index
    %c0_65 = arith.constant 0 : index
    %234 = vector.load %arg3[%c5, %c0_64, %c0_65] : memref<8x8x384xf32, #tpu.memory_space<vmem>>, vector<1x8x384xf32>
    %235 = vector.shape_cast %234 : vector<1x8x384xf32> to vector<8x384xf32>
    %cst_66 = arith.constant dense<0.000000e+00> : vector<8x384xf32>
    %236 = tpu.matmul %224, %4, %cst_66 {dimension_numbers = #tpu.dot_dimension_numbers<[1], [0], [0], [1], [0, 0, 1, 1], [], []>} : vector<8x128xf32>, vector<128x384xf32>, vector<8x384xf32> -> vector<8x384xf32>
    %237 = vector.extract_strided_slice %235 {offsets = [0, 0], sizes = [8, 128], strides = [1, 1]} : vector<8x384xf32> to vector<8x128xf32>
    %238 = vector.extract_strided_slice %236 {offsets = [0, 0], sizes = [8, 128], strides = [1, 1]} : vector<8x384xf32> to vector<8x128xf32>
    %239 = arith.addf %237, %238 : vector<8x128xf32>
    %240 = arith.negf %239 : vector<8x128xf32>
    %241 = math.exp %240 : vector<8x128xf32>
    %cst_67 = arith.constant 1.000000e+00 : f32
    %242 = vector.broadcast %cst_67 : f32 to vector<8x128xf32>
    %243 = arith.addf %242, %241 : vector<8x128xf32>
    %244 = arith.divf %242, %243 : vector<8x128xf32>
    %245 = vector.extract_strided_slice %235 {offsets = [0, 128], sizes = [8, 128], strides = [1, 1]} : vector<8x384xf32> to vector<8x128xf32>
    %246 = vector.extract_strided_slice %236 {offsets = [0, 128], sizes = [8, 128], strides = [1, 1]} : vector<8x384xf32> to vector<8x128xf32>
    %247 = arith.addf %245, %246 : vector<8x128xf32>
    %248 = arith.negf %247 : vector<8x128xf32>
    %249 = math.exp %248 : vector<8x128xf32>
    %cst_68 = arith.constant 1.000000e+00 : f32
    %250 = vector.broadcast %cst_68 : f32 to vector<8x128xf32>
    %251 = arith.addf %250, %249 : vector<8x128xf32>
    %252 = arith.divf %250, %251 : vector<8x128xf32>
    %253 = vector.extract_strided_slice %235 {offsets = [0, 256], sizes = [8, 128], strides = [1, 1]} : vector<8x384xf32> to vector<8x128xf32>
    %254 = vector.extract_strided_slice %236 {offsets = [0, 256], sizes = [8, 128], strides = [1, 1]} : vector<8x384xf32> to vector<8x128xf32>
    %255 = vector.broadcast %5 : vector<1x128xf32> to vector<8x128xf32>
    %256 = arith.addf %254, %255 : vector<8x128xf32>
    %257 = arith.mulf %244, %256 : vector<8x128xf32>
    %258 = arith.addf %253, %257 : vector<8x128xf32>
    %259 = math.tanh %258 : vector<8x128xf32>
    %cst_69 = arith.constant 1.000000e+00 : f32
    %260 = vector.broadcast %cst_69 : f32 to vector<8x128xf32>
    %261 = arith.subf %260, %252 : vector<8x128xf32>
    %262 = arith.mulf %261, %259 : vector<8x128xf32>
    %263 = arith.mulf %252, %224 : vector<8x128xf32>
    %264 = arith.addf %262, %263 : vector<8x128xf32>
    %265 = vector.broadcast %233 : i32 to vector<8x1xi32>
    %266 = arith.cmpi sgt, %3, %265 : vector<8x1xi32>
    %267 = vector.shape_cast %266 : vector<8x1xi1> to vector<8x1xi1>
    %268 = vector.broadcast %267 : vector<8x1xi1> to vector<8x128xi1>
    %269 = arith.select %268, %264, %224 : vector<8x128xi1>, vector<8x128xf32>
    %cst_70 = arith.constant 0.000000e+00 : f32
    %270 = vector.shape_cast %266 : vector<8x1xi1> to vector<8x1xi1>
    %271 = vector.broadcast %270 : vector<8x1xi1> to vector<8x128xi1>
    %272 = vector.broadcast %cst_70 : f32 to vector<8x128xf32>
    %273 = arith.select %271, %264, %272 : vector<8x128xi1>, vector<8x128xf32>
    %c5_71 = arith.constant 5 : index
    %c0_72 = arith.constant 0 : index
    %c0_73 = arith.constant 0 : index
    %274 = vector.load %arg6[%c5_71, %c0_72, %c0_73] : memref<8x8x128xf32, #tpu.memory_space<vmem>>, vector<1x8x128xf32>
    %275 = vector.shape_cast %274 : vector<1x8x128xf32> to vector<8x128xf32>
    %276 = vector.shape_cast %273 : vector<8x128xf32> to vector<1x8x128xf32>
    tpu.vector_store %arg6[%c5_71, %c0_72, %c0_73], %276 {strides = array<i32>} : memref<8x8x128xf32, #tpu.memory_space<vmem>>, vector<1x8x128xf32>,
    %c8_i32_74 = arith.constant 8 : i32
    %277 = arith.muli %arg1, %c8_i32_74 : i32
    %c6_i32 = arith.constant 6 : i32
    %278 = arith.addi %277, %c6_i32 : i32
    %c6 = arith.constant 6 : index
    %c0_75 = arith.constant 0 : index
    %c0_76 = arith.constant 0 : index
    %279 = vector.load %arg3[%c6, %c0_75, %c0_76] : memref<8x8x384xf32, #tpu.memory_space<vmem>>, vector<1x8x384xf32>
    %280 = vector.shape_cast %279 : vector<1x8x384xf32> to vector<8x384xf32>
    %cst_77 = arith.constant dense<0.000000e+00> : vector<8x384xf32>
    %281 = tpu.matmul %269, %4, %cst_77 {dimension_numbers = #tpu.dot_dimension_numbers<[1], [0], [0], [1], [0, 0, 1, 1], [], []>} : vector<8x128xf32>, vector<128x384xf32>, vector<8x384xf32> -> vector<8x384xf32>
    %282 = vector.extract_strided_slice %280 {offsets = [0, 0], sizes = [8, 128], strides = [1, 1]} : vector<8x384xf32> to vector<8x128xf32>
    %283 = vector.extract_strided_slice %281 {offsets = [0, 0], sizes = [8, 128], strides = [1, 1]} : vector<8x384xf32> to vector<8x128xf32>
    %284 = arith.addf %282, %283 : vector<8x128xf32>
    %285 = arith.negf %284 : vector<8x128xf32>
    %286 = math.exp %285 : vector<8x128xf32>
    %cst_78 = arith.constant 1.000000e+00 : f32
    %287 = vector.broadcast %cst_78 : f32 to vector<8x128xf32>
    %288 = arith.addf %287, %286 : vector<8x128xf32>
    %289 = arith.divf %287, %288 : vector<8x128xf32>
    %290 = vector.extract_strided_slice %280 {offsets = [0, 128], sizes = [8, 128], strides = [1, 1]} : vector<8x384xf32> to vector<8x128xf32>
    %291 = vector.extract_strided_slice %281 {offsets = [0, 128], sizes = [8, 128], strides = [1, 1]} : vector<8x384xf32> to vector<8x128xf32>
    %292 = arith.addf %290, %291 : vector<8x128xf32>
    %293 = arith.negf %292 : vector<8x128xf32>
    %294 = math.exp %293 : vector<8x128xf32>
    %cst_79 = arith.constant 1.000000e+00 : f32
    %295 = vector.broadcast %cst_79 : f32 to vector<8x128xf32>
    %296 = arith.addf %295, %294 : vector<8x128xf32>
    %297 = arith.divf %295, %296 : vector<8x128xf32>
    %298 = vector.extract_strided_slice %280 {offsets = [0, 256], sizes = [8, 128], strides = [1, 1]} : vector<8x384xf32> to vector<8x128xf32>
    %299 = vector.extract_strided_slice %281 {offsets = [0, 256], sizes = [8, 128], strides = [1, 1]} : vector<8x384xf32> to vector<8x128xf32>
    %300 = vector.broadcast %5 : vector<1x128xf32> to vector<8x128xf32>
    %301 = arith.addf %299, %300 : vector<8x128xf32>
    %302 = arith.mulf %289, %301 : vector<8x128xf32>
    %303 = arith.addf %298, %302 : vector<8x128xf32>
    %304 = math.tanh %303 : vector<8x128xf32>
    %cst_80 = arith.constant 1.000000e+00 : f32
    %305 = vector.broadcast %cst_80 : f32 to vector<8x128xf32>
    %306 = arith.subf %305, %297 : vector<8x128xf32>
    %307 = arith.mulf %306, %304 : vector<8x128xf32>
    %308 = arith.mulf %297, %269 : vector<8x128xf32>
    %309 = arith.addf %307, %308 : vector<8x128xf32>
    %310 = vector.broadcast %278 : i32 to vector<8x1xi32>
    %311 = arith.cmpi sgt, %3, %310 : vector<8x1xi32>
    %312 = vector.shape_cast %311 : vector<8x1xi1> to vector<8x1xi1>
    %313 = vector.broadcast %312 : vector<8x1xi1> to vector<8x128xi1>
    %314 = arith.select %313, %309, %269 : vector<8x128xi1>, vector<8x128xf32>
    %cst_81 = arith.constant 0.000000e+00 : f32
    %315 = vector.shape_cast %311 : vector<8x1xi1> to vector<8x1xi1>
    %316 = vector.broadcast %315 : vector<8x1xi1> to vector<8x128xi1>
    %317 = vector.broadcast %cst_81 : f32 to vector<8x128xf32>
    %318 = arith.select %316, %309, %317 : vector<8x128xi1>, vector<8x128xf32>
    %c6_82 = arith.constant 6 : index
    %c0_83 = arith.constant 0 : index
    %c0_84 = arith.constant 0 : index
    %319 = vector.load %arg6[%c6_82, %c0_83, %c0_84] : memref<8x8x128xf32, #tpu.memory_space<vmem>>, vector<1x8x128xf32>
    %320 = vector.shape_cast %319 : vector<1x8x128xf32> to vector<8x128xf32>
    %321 = vector.shape_cast %318 : vector<8x128xf32> to vector<1x8x128xf32>
    tpu.vector_store %arg6[%c6_82, %c0_83, %c0_84], %321 {strides = array<i32>} : memref<8x8x128xf32, #tpu.memory_space<vmem>>, vector<1x8x128xf32>,
    %c8_i32_85 = arith.constant 8 : i32
    %322 = arith.muli %arg1, %c8_i32_85 : i32
    %c7_i32 = arith.constant 7 : i32
    %323 = arith.addi %322, %c7_i32 : i32
    %c7 = arith.constant 7 : index
    %c0_86 = arith.constant 0 : index
    %c0_87 = arith.constant 0 : index
    %324 = vector.load %arg3[%c7, %c0_86, %c0_87] : memref<8x8x384xf32, #tpu.memory_space<vmem>>, vector<1x8x384xf32>
    %325 = vector.shape_cast %324 : vector<1x8x384xf32> to vector<8x384xf32>
    %cst_88 = arith.constant dense<0.000000e+00> : vector<8x384xf32>
    %326 = tpu.matmul %314, %4, %cst_88 {dimension_numbers = #tpu.dot_dimension_numbers<[1], [0], [0], [1], [0, 0, 1, 1], [], []>} : vector<8x128xf32>, vector<128x384xf32>, vector<8x384xf32> -> vector<8x384xf32>
    %327 = vector.extract_strided_slice %325 {offsets = [0, 0], sizes = [8, 128], strides = [1, 1]} : vector<8x384xf32> to vector<8x128xf32>
    %328 = vector.extract_strided_slice %326 {offsets = [0, 0], sizes = [8, 128], strides = [1, 1]} : vector<8x384xf32> to vector<8x128xf32>
    %329 = arith.addf %327, %328 : vector<8x128xf32>
    %330 = arith.negf %329 : vector<8x128xf32>
    %331 = math.exp %330 : vector<8x128xf32>
    %cst_89 = arith.constant 1.000000e+00 : f32
    %332 = vector.broadcast %cst_89 : f32 to vector<8x128xf32>
    %333 = arith.addf %332, %331 : vector<8x128xf32>
    %334 = arith.divf %332, %333 : vector<8x128xf32>
    %335 = vector.extract_strided_slice %325 {offsets = [0, 128], sizes = [8, 128], strides = [1, 1]} : vector<8x384xf32> to vector<8x128xf32>
    %336 = vector.extract_strided_slice %326 {offsets = [0, 128], sizes = [8, 128], strides = [1, 1]} : vector<8x384xf32> to vector<8x128xf32>
    %337 = arith.addf %335, %336 : vector<8x128xf32>
    %338 = arith.negf %337 : vector<8x128xf32>
    %339 = math.exp %338 : vector<8x128xf32>
    %cst_90 = arith.constant 1.000000e+00 : f32
    %340 = vector.broadcast %cst_90 : f32 to vector<8x128xf32>
    %341 = arith.addf %340, %339 : vector<8x128xf32>
    %342 = arith.divf %340, %341 : vector<8x128xf32>
    %343 = vector.extract_strided_slice %325 {offsets = [0, 256], sizes = [8, 128], strides = [1, 1]} : vector<8x384xf32> to vector<8x128xf32>
    %344 = vector.extract_strided_slice %326 {offsets = [0, 256], sizes = [8, 128], strides = [1, 1]} : vector<8x384xf32> to vector<8x128xf32>
    %345 = vector.broadcast %5 : vector<1x128xf32> to vector<8x128xf32>
    %346 = arith.addf %344, %345 : vector<8x128xf32>
    %347 = arith.mulf %334, %346 : vector<8x128xf32>
    %348 = arith.addf %343, %347 : vector<8x128xf32>
    %349 = math.tanh %348 : vector<8x128xf32>
    %cst_91 = arith.constant 1.000000e+00 : f32
    %350 = vector.broadcast %cst_91 : f32 to vector<8x128xf32>
    %351 = arith.subf %350, %342 : vector<8x128xf32>
    %352 = arith.mulf %351, %349 : vector<8x128xf32>
    %353 = arith.mulf %342, %314 : vector<8x128xf32>
    %354 = arith.addf %352, %353 : vector<8x128xf32>
    %355 = vector.broadcast %323 : i32 to vector<8x1xi32>
    %356 = arith.cmpi sgt, %3, %355 : vector<8x1xi32>
    %357 = vector.shape_cast %356 : vector<8x1xi1> to vector<8x1xi1>
    %358 = vector.broadcast %357 : vector<8x1xi1> to vector<8x128xi1>
    %359 = arith.select %358, %354, %314 : vector<8x128xi1>, vector<8x128xf32>
    %cst_92 = arith.constant 0.000000e+00 : f32
    %360 = vector.shape_cast %356 : vector<8x1xi1> to vector<8x1xi1>
    %361 = vector.broadcast %360 : vector<8x1xi1> to vector<8x128xi1>
    %362 = vector.broadcast %cst_92 : f32 to vector<8x128xf32>
    %363 = arith.select %361, %354, %362 : vector<8x128xi1>, vector<8x128xf32>
    %c7_93 = arith.constant 7 : index
    %c0_94 = arith.constant 0 : index
    %c0_95 = arith.constant 0 : index
    %364 = vector.load %arg6[%c7_93, %c0_94, %c0_95] : memref<8x8x128xf32, #tpu.memory_space<vmem>>, vector<1x8x128xf32>
    %365 = vector.shape_cast %364 : vector<1x8x128xf32> to vector<8x128xf32>
    %366 = vector.shape_cast %363 : vector<8x128xf32> to vector<1x8x128xf32>
    tpu.vector_store %arg6[%c7_93, %c0_94, %c0_95], %366 {strides = array<i32>} : memref<8x8x128xf32, #tpu.memory_space<vmem>>, vector<1x8x128xf32>,
    %c0_96 = arith.constant 0 : index
    %c0_97 = arith.constant 0 : index
    %367 = vector.load %arg8[%c0_96, %c0_97] : memref<8x128xf32, #tpu.memory_space<vmem>>, vector<8x128xf32>
    tpu.vector_store %arg8[%c0_96, %c0_97], %359 {strides = array<i32>} : memref<8x128xf32, #tpu.memory_space<vmem>>, vector<8x128xf32>,
    %c0_i32_98 = arith.constant 0 : i32
    %368 = arith.cmpi eq, %arg1, %c0_i32_98 : i32
    %369 = arith.extui %368 : i1 to i32
    %c0_i32_99 = arith.constant 0 : i32
    %370 = arith.cmpi ne, %369, %c0_i32_99 : i32
    scf.if %370 {
      %c0_100 = arith.constant 0 : index
      %c0_101 = arith.constant 0 : index
      %371 = vector.load %arg8[%c0_100, %c0_101] : memref<8x128xf32, #tpu.memory_space<vmem>>, vector<8x128xf32>
      %c0_102 = arith.constant 0 : index
      %c0_103 = arith.constant 0 : index
      %372 = vector.load %arg7[%c0_102, %c0_103] : memref<8x128xf32, #tpu.memory_space<vmem>>, vector<8x128xf32>
      tpu.vector_store %arg7[%c0_102, %c0_103], %371 {strides = array<i32>} : memref<8x128xf32, #tpu.memory_space<vmem>>, vector<8x128xf32>,
    } else {
    }
    return
  }
  func.func @transform_0(%arg0: i32, %arg1: i32) -> (i32, i32) {
    %c0_i32 = arith.constant 0 : i32
    %c0_i32_0 = arith.constant 0 : i32
    return %arg0, %c0_i32 : i32, i32
  }
  func.func @transform_1(%arg0: i32, %arg1: i32) -> (i32, i32, i32) {
    %c0_i32 = arith.constant 0 : i32
    %c0_i32_0 = arith.constant 0 : i32
    return %arg1, %arg0, %c0_i32 : i32, i32, i32
  }
  func.func @transform_2(%arg0: i32, %arg1: i32) -> (i32, i32) {
    %c0_i32 = arith.constant 0 : i32
    %c0_i32_0 = arith.constant 0 : i32
    %c0_i32_1 = arith.constant 0 : i32
    return %c0_i32, %c0_i32_0 : i32, i32
  }
  func.func @transform_3(%arg0: i32, %arg1: i32) -> (i32, i32) {
    %c0_i32 = arith.constant 0 : i32
    %c0_i32_0 = arith.constant 0 : i32
    %c0_i32_1 = arith.constant 0 : i32
    return %c0_i32, %c0_i32_0 : i32, i32
  }
  func.func @transform_4(%arg0: i32, %arg1: i32) -> (i32, i32, i32) {
    %c0_i32 = arith.constant 0 : i32
    %c0_i32_0 = arith.constant 0 : i32
    return %arg1, %arg0, %c0_i32 : i32, i32, i32
  }
  func.func @transform_5(%arg0: i32, %arg1: i32) -> (i32, i32) {
    %c0_i32 = arith.constant 0 : i32
    %c0_i32_0 = arith.constant 0 : i32
    return %arg0, %c0_i32 : i32, i32
  }
}

</mosaic_0001>

<llo_original>
// kernel: tpu_custom_call.1
$region0: #{tpu_custom_call.1}
  #allocation0 [shape = 'u32[]', space=smem, size = 0x4, offset = 0x4, fixed_abs, tag = 'smem constant byte address 0x4 - core index']
  #allocation1 [shape = 'u32[72,128]{1,0:T(1,128)}', space=vmem, size = 0x9000, scoped, tag = 'internal scratch']
  #allocation2 [shape = 'f32[8,128]{1,0:T(8,128)}', space=vmem, size = 0x1000, scoped, tag = 'scratch operand']
  %s0 = inlined_call_operand.vmem [shape: s32[8,1], index: 0, kind: input, shape index: {}]
  %s1 = inlined_call_operand.hbm [shape: f32[8,8,384], index: 1, kind: input, shape index: {}]
  %s2 = inlined_call_operand.hbm [shape: f32[128,384], index: 2, kind: input, shape index: {}]
  %s3 = inlined_call_operand.vmem [shape: f32[1,128], index: 3, kind: input, shape index: {}]
  %s4 = inlined_call_operand.hbm [shape: f32[8,8,128], index: 4, kind: output, shape index: {0}]
  %s5 = inlined_call_operand.hbm [shape: f32[8,128], index: 5, kind: output, shape index: {1}]
  %6 = xla_tuple %s4, %s5
  %s7 = sld [smem:[#allocation0]]
  $region50: #{tpu_custom_call.1} parent=0
    _
  %s9 = ssub.s32 1, %s7
  %s10 = scalar_select 0, %s9, %s7
  $region1: #{tpu_custom_call.1} parent=0
    #allocation3 [shape = 'u8[98304]{0}', space=vmem, size = 0x18000, scoped, tag = 'input window, operand 1, single buffered']
    #allocation4 [shape = 's32[1]{0}', space=sflag, size = 0x4, scoped, tag = 'scoped memory for tpu_custom_call.1']
    #allocation5 [shape = 's32[1]{0}', space=sflag, size = 0x4, scoped, tag = 'scoped memory for tpu_custom_call.1']
    #allocation6 [shape = 'u8[196608]{0}', space=vmem, size = 0x30000, scoped, tag = 'input window, operand 2, single buffered']
    #allocation7 [shape = 's32[1]{0}', space=sflag, size = 0x4, scoped, tag = 'scoped memory for tpu_custom_call.1']
    #allocation8 [shape = 'u8[32768]{0}', space=vmem, size = 0x8000, scoped, tag = 'output window, operand 0, single buffered']
    #allocation9 [shape = 'u8[4096]{0}', space=vmem, size = 0x1000, scoped, tag = 'output window, operand 1, single buffered']
    #allocation10 [shape = 's32[1]{0}', space=sflag, size = 0x4, scoped, tag = 'scoped memory for tpu_custom_call.1']
    %11 = vsyncpa [#allocation4], 0
    %12 = vsyncpa [#allocation7], 0
    %13 = vsyncpa [#allocation5], 0
    %14 = vsyncpa [#allocation10], 0
    // Predicated region
    $region2: #{tpu_custom_call.1} parent=1 // pred_check
      _
    $region3: #{tpu_custom_call.1} parent=1 // pred_check_branch
      %16 = sbr.rel (0) target = $region5
    $region4: #{tpu_custom_call.1} parent=1 // pred_region
      _
    $region5: #{tpu_custom_call.1} parent=1 // pred_fallthru
      _
    // Predicated region
    $region6: #{tpu_custom_call.1} parent=1 // pred_check
      _
    $region7: #{tpu_custom_call.1} parent=1 // pred_check_branch
      %18 = sbr.rel (0) target = $region9
    $region8: #{tpu_custom_call.1} parent=1 // pred_region
      %20 = vsyncadd [#allocation4], 0
      %s21 = sshll.u32 %s1, 4
      %s22 = int_to_ptr.hbm [resolvable:$true] %s21
      %s23 = sshll.u32 [#allocation3], 4
      %s24 = int_to_ptr.vmem [resolvable:$true] %s23
      %29 = dma.hbm_to_vmem [thread:$0]  %s22, 3072, %s24, [#allocation4], 384, 384, 24
    $region9: #{tpu_custom_call.1} parent=1 // pred_fallthru
      _
    // Predicated region
    $region10: #{tpu_custom_call.1} parent=1 // pred_check
      _
    $region11: #{tpu_custom_call.1} parent=1 // pred_check_branch
      %31 = sbr.rel (0) target = $region13
    $region12: #{tpu_custom_call.1} parent=1 // pred_region
      %33 = vsyncadd [#allocation7], 0
      %s34 = sshll.u32 %s2, 4
      %s35 = int_to_ptr.hbm [resolvable:$true] %s34
      %s36 = sshll.u32 [#allocation6], 4
      %s37 = int_to_ptr.vmem [resolvable:$true] %s36
      %42 = dma.hbm_to_vmem [thread:$0]  %s35, 6144, %s37, [#allocation7], 384, 384, 24
    $region13: #{tpu_custom_call.1} parent=1 // pred_fallthru
      _
    // Predicated region
    $region14: #{tpu_custom_call.1} parent=1 // pred_check
      _
    $region15: #{tpu_custom_call.1} parent=1 // pred_check_branch
      %44 = sbr.rel (0) target = $region17
    $region16: #{tpu_custom_call.1} parent=1 // pred_region
      _
    $region17: #{tpu_custom_call.1} parent=1 // pred_fallthru
      _
    // Predicated region
    $region18: #{tpu_custom_call.1} parent=1 // pred_check
      _
    $region19: #{tpu_custom_call.1} parent=1 // pred_check_branch
      %46 = sbr.rel (0) target = $region21
    $region20: #{tpu_custom_call.1} parent=1 // pred_region
      %48 = dma.done [#allocation4], 3072
    $region21: #{tpu_custom_call.1} parent=1 // pred_fallthru
      _
    // Predicated region
    $region22: #{tpu_custom_call.1} parent=1 // pred_check
      _
    $region23: #{tpu_custom_call.1} parent=1 // pred_check_branch
      %50 = sbr.rel (0) target = $region25
    $region24: #{tpu_custom_call.1} parent=1 // pred_region
      %52 = dma.done [#allocation7], 6144
    $region25: #{tpu_custom_call.1} parent=1 // pred_fallthru
      _
    %p53 = scmp.eq.s32.totalorder 0, 0
    // Predicated region
    $region26: #{tpu_custom_call.1} parent=1 // pred_check
      %p54 = pneg %p53
    $region27: #{tpu_custom_call.1} parent=1 // pred_check_branch
      %56 = sbr.rel (%p54) target = $region29
    $region28: #{tpu_custom_call.1} parent=1 // pred_region
      %57 = vst [vmem:[#allocation2] sm:$0xff] 0.0
    $region29: #{tpu_custom_call.1} parent=1 // pred_fallthru
      _
    %v58 = vld [vmem:[%s0] sm:$0xff]
    %v59 = vld [vmem:[#allocation6] sm:$0xff]
    %v60 = vld [vmem:[#allocation6 + $0x8] sm:$0xff]
    %v61 = vld [vmem:[#allocation6 + $0x10] sm:$0xff]
    %v62 = vld [vmem:[#allocation6 + $0x18] sm:$0xff]
    %v63 = vld [vmem:[#allocation6 + $0x20] sm:$0xff]
    %v64 = vld [vmem:[#allocation6 + $0x28] sm:$0xff]
    %v65 = vld [vmem:[#allocation6 + $0x30] sm:$0xff]
    %v66 = vld [vmem:[#allocation6 + $0x38] sm:$0xff]
    %v67 = vld [vmem:[#allocation6 + $0x40] sm:$0xff]
    %v68 = vld [vmem:[#allocation6 + $0x48] sm:$0xff]
    %v69 = vld [vmem:[#allocation6 + $0x50] sm:$0xff]
    %v70 = vld [vmem:[#allocation6 + $0x58] sm:$0xff]
    %v71 = vld [vmem:[#allocation6 + $0x60] sm:$0xff]
    %v72 = vld [vmem:[#allocation6 + $0x68] sm:$0xff]
    %v73 = vld [vmem:[#allocation6 + $0x70] sm:$0xff]
    %v74 = vld [vmem:[#allocation6 + $0x78] sm:$0xff]
    %v75 = vld [vmem:[#allocation6 + $0x80] sm:$0xff]
    %v76 = vld [vmem:[#allocation6 + $0x88] sm:$0xff]
    %v77 = vld [vmem:[#allocation6 + $0x90] sm:$0xff]
    %v78 = vld [vmem:[#allocation6 + $0x98] sm:$0xff]
    %v79 = vld [vmem:[#allocation6 + $0xa0] sm:$0xff]
    %v80 = vld [vmem:[#allocation6 + $0xa8] sm:$0xff]
    %v81 = vld [vmem:[#allocation6 + $0xb0] sm:$0xff]
    %v82 = vld [vmem:[#allocation6 + $0xb8] sm:$0xff]
    %v83 = vld [vmem:[#allocation6 + $0xc0] sm:$0xff]
    %v84 = vld [vmem:[#allocation6 + $0xc8] sm:$0xff]
    %v85 = vld [vmem:[#allocation6 + $0xd0] sm:$0xff]
    %v86 = vld [vmem:[#allocation6 + $0xd8] sm:$0xff]
    %v87 = vld [vmem:[#allocation6 + $0xe0] sm:$0xff]
    %v88 = vld [vmem:[#allocation6 + $0xe8] sm:$0xff]
    %v89 = vld [vmem:[#allocation6 + $0xf0] sm:$0xff]
    %v90 = vld [vmem:[#allocation6 + $0xf8] sm:$0xff]
    %v91 = vld [vmem:[#allocation6 + $0x100] sm:$0xff]
    %v92 = vld [vmem:[#allocation6 + $0x108] sm:$0xff]
    %v93 = vld [vmem:[#allocation6 + $0x110] sm:$0xff]
    %v94 = vld [vmem:[#allocation6 + $0x118] sm:$0xff]
    %v95 = vld [vmem:[#allocation6 + $0x120] sm:$0xff]
    %v96 = vld [vmem:[#allocation6 + $0x128] sm:$0xff]
    %v97 = vld [vmem:[#allocation6 + $0x130] sm:$0xff]
    %v98 = vld [vmem:[#allocation6 + $0x138] sm:$0xff]
    %v99 = vld [vmem:[#allocation6 + $0x140] sm:$0xff]
    %v100 = vld [vmem:[#allocation6 + $0x148] sm:$0xff]
    %v101 = vld [vmem:[#allocation6 + $0x150] sm:$0xff]
    %v102 = vld [vmem:[#allocation6 + $0x158] sm:$0xff]
    %v103 = vld [vmem:[#allocation6 + $0x160] sm:$0xff]
    %v104 = vld [vmem:[#allocation6 + $0x168] sm:$0xff]
    %v105 = vld [vmem:[#allocation6 + $0x170] sm:$0xff]
    %v106 = vld [vmem:[#allocation6 + $0x178] sm:$0xff]
    %v107 = vld [vmem:[%s3] sm:$0x1]
    %v108 = vld [vmem:[#allocation2] sm:$0xff]
    %s109 = smul.u32 0, 8
    %v110 = vld [vmem:[#allocation3] sm:$0xff]
    %v111 = vld [vmem:[#allocation3 + $0x8] sm:$0xff]
    %v112 = vld [vmem:[#allocation3 + $0x10] sm:$0xff]
    %113 = vmatpush.msra.mxu0 %v104
    %114 = vmatpush.msra.mxu0 %v101
    %115 = vmatpush.msra.mxu0 %v98
    %116 = vmatpush.msra.mxu0 %v95
    %117 = vmatpush.msra.mxu0 %v92
    %118 = vmatpush.msra.mxu0 %v89
    %119 = vmatpush.msra.mxu0 %v86
    %120 = vmatpush.msra.mxu0 %v83
    %121 = vmatpush.msra.mxu0 %v80
    %122 = vmatpush.msra.mxu0 %v77
    %123 = vmatpush.msra.mxu0 %v74
    %124 = vmatpush.msra.mxu0 %v71
    %125 = vmatpush.msra.mxu0 %v68
    %126 = vmatpush.msra.mxu0 %v65
    %127 = vmatpush.msra.mxu0 %v62
    %128 = vmatpush.msra.mxu0 %v59
    %129 = vmatmul.f32.gmra.mxu0 %v108
    %v130 = vpop.f32.mrf.mxu0
    %v131 = vadd.f32 0.0, %v130
    %132 = vdwg.mxu0
    %133 = vmatpush.msra.mxu0 %v105
    %134 = vmatpush.msra.mxu0 %v102
    %135 = vmatpush.msra.mxu0 %v99
    %136 = vmatpush.msra.mxu0 %v96
    %137 = vmatpush.msra.mxu0 %v93
    %138 = vmatpush.msra.mxu0 %v90
    %139 = vmatpush.msra.mxu0 %v87
    %140 = vmatpush.msra.mxu0 %v84
    %141 = vmatpush.msra.mxu0 %v81
    %142 = vmatpush.msra.mxu0 %v78
    %143 = vmatpush.msra.mxu0 %v75
    %144 = vmatpush.msra.mxu0 %v72
    %145 = vmatpush.msra.mxu0 %v69
    %146 = vmatpush.msra.mxu0 %v66
    %147 = vmatpush.msra.mxu0 %v63
    %148 = vmatpush.msra.mxu0 %v60
    %149 = vmatmul.f32.gmra.mxu0 %v108
    %v150 = vpop.f32.mrf.mxu0
    %v151 = vadd.f32 0.0, %v150
    %152 = vdwg.mxu0
    %153 = vmatpush.msra.mxu0 %v106
    %154 = vmatpush.msra.mxu0 %v103
    %155 = vmatpush.msra.mxu0 %v100
    %156 = vmatpush.msra.mxu0 %v97
    %157 = vmatpush.msra.mxu0 %v94
    %158 = vmatpush.msra.mxu0 %v91
    %159 = vmatpush.msra.mxu0 %v88
    %160 = vmatpush.msra.mxu0 %v85
    %161 = vmatpush.msra.mxu0 %v82
    %162 = vmatpush.msra.mxu0 %v79
    %163 = vmatpush.msra.mxu0 %v76
    %164 = vmatpush.msra.mxu0 %v73
    %165 = vmatpush.msra.mxu0 %v70
    %166 = vmatpush.msra.mxu0 %v67
    %167 = vmatpush.msra.mxu0 %v64
    %168 = vmatpush.msra.mxu0 %v61
    %169 = vmatmul.f32.gmra.mxu0 %v108
    %v170 = vpop.f32.mrf.mxu0
    %v171 = vadd.f32 0.0, %v170
    %172 = vdwg.mxu0
    %v173 = vadd.f32 %v110, %v131
    %v174 = vxor.u32 %v173, 2147483648
    %v175 = vmul.f32 %v174, 1.442695
    %v176 = vpow.pop %v175
    %v177 = vadd.f32 %v176, 1.0
    %v178 = vrcp.pop %v177
    %v179 = vmul.f32 %v177, %v178
    %v180 = vsub.f32 1.0, %v179
    %v181 = vmul.f32 %v178, %v180
    %v182 = vadd.f32 %v178, %v181
    %vm183 = vweird.f32 %v177
    %vm184 = vweird.f32 %v178
    %vm185 = vmor %vm183, %vm184
    %v186 = vsel %vm185, %v178, %v182
    %v187 = vand.u32 2147483647, %v177
    %vm188 = vcmp.eq.f32.partialorder %v187, 8.507059e+37
    %v189 = vand.u32 %v177, 2147483648
    %v190 = vor.u32 1.1754944e-38, %v189
    %v191 = vsel %vm188, %v190, %v186
    %v192 = vmul.f32 1.0, %v191
    %v193 = vadd.f32 %v111, %v151
    %v194 = vxor.u32 %v193, 2147483648
    %v195 = vmul.f32 %v194, 1.442695
    %v196 = vpow.pop %v195
    %v197 = vadd.f32 %v196, 1.0
    %v198 = vrcp.pop %v197
    %v199 = vmul.f32 %v197, %v198
    %v200 = vsub.f32 1.0, %v199
    %v201 = vmul.f32 %v198, %v200
    %v202 = vadd.f32 %v198, %v201
    %vm203 = vweird.f32 %v197
    %vm204 = vweird.f32 %v198
    %vm205 = vmor %vm203, %vm204
    %v206 = vsel %vm205, %v198, %v202
    %v207 = vand.u32 2147483647, %v197
    %vm208 = vcmp.eq.f32.partialorder %v207, 8.507059e+37
    %v209 = vand.u32 %v197, 2147483648
    %v210 = vor.u32 1.1754944e-38, %v209
    %v211 = vsel %vm208, %v210, %v206
    %v212 = vmul.f32 1.0, %v211
    %v214 = vperm.slane %v107, 0
    %v216 = vadd.f32 %v171, %v214
    %v217 = vmul.f32 %v192, %v216
    %v218 = vadd.f32 %v112, %v217
    %v219 = vtanh.pop %v218
    %v220 = vsub.f32 1.0, %v212
    %v221 = vmul.f32 %v220, %v219
    %v222 = vmul.f32 %v212, %v108
    %v223 = vadd.f32 %v221, %v222
    %v224 = vstv %s109
    %vm225 = vcmp.gt.s32.totalorder %v58, %v224
    %v226 = vsel %vm225, 1, 0
    %227 = vset.pattern.permute.xlu0 0
    %228 = vperm.xlu0 %227, %v226
    %v229 = vpop.permute.xlu0 %228
    %vm230 = vcmp.eq.s32.totalorder %v229, 1
    %v231 = vsel %vm230, %v223, %v108
    %v232 = vsel %vm230, %v223, 0.0
    %233 = vst [vmem:[#allocation8] sm:$0xff] %v232
    %s234 = sadd.s32 %s109, 1
    %s235 = scalar_lea.vmem [#allocation3], 24
    %v236 = vld [vmem:[%s235] sm:$0xff]
    %v237 = vld [vmem:[%s235 + $0x8] sm:$0xff]
    %v238 = vld [vmem:[%s235 + $0x10] sm:$0xff]
    %239 = vmatpush.msra.mxu0 %v104
    %240 = vmatpush.msra.mxu0 %v101
    %241 = vmatpush.msra.mxu0 %v98
    %242 = vmatpush.msra.mxu0 %v95
    %243 = vmatpush.msra.mxu0 %v92
    %244 = vmatpush.msra.mxu0 %v89
    %245 = vmatpush.msra.mxu0 %v86
    %246 = vmatpush.msra.mxu0 %v83
    %247 = vmatpush.msra.mxu0 %v80
    %248 = vmatpush.msra.mxu0 %v77
    %249 = vmatpush.msra.mxu0 %v74
    %250 = vmatpush.msra.mxu0 %v71
    %251 = vmatpush.msra.mxu0 %v68
    %252 = vmatpush.msra.mxu0 %v65
    %253 = vmatpush.msra.mxu0 %v62
    %254 = vmatpush.msra.mxu0 %v59
    %255 = vmatmul.f32.gmra.mxu0 %v231
    %v256 = vpop.f32.mrf.mxu0
    %v257 = vadd.f32 0.0, %v256
    %258 = vdwg.mxu0
    %259 = vmatpush.msra.mxu0 %v105
    %260 = vmatpush.msra.mxu0 %v102
    %261 = vmatpush.msra.mxu0 %v99
    %262 = vmatpush.msra.mxu0 %v96
    %263 = vmatpush.msra.mxu0 %v93
    %264 = vmatpush.msra.mxu0 %v90
    %265 = vmatpush.msra.mxu0 %v87
    %266 = vmatpush.msra.mxu0 %v84
    %267 = vmatpush.msra.mxu0 %v81
    %268 = vmatpush.msra.mxu0 %v78
    %269 = vmatpush.msra.mxu0 %v75
    %270 = vmatpush.msra.mxu0 %v72
    %271 = vmatpush.msra.mxu0 %v69
    %272 = vmatpush.msra.mxu0 %v66
    %273 = vmatpush.msra.mxu0 %v63
    %274 = vmatpush.msra.mxu0 %v60
    %275 = vmatmul.f32.gmra.mxu0 %v231
    %v276 = vpop.f32.mrf.mxu0
    %v277 = vadd.f32 0.0, %v276
    %278 = vdwg.mxu0
    %279 = vmatpush.msra.mxu0 %v106
    %280 = vmatpush.msra.mxu0 %v103
    %281 = vmatpush.msra.mxu0 %v100
    %282 = vmatpush.msra.mxu0 %v97
    %283 = vmatpush.msra.mxu0 %v94
    %284 = vmatpush.msra.mxu0 %v91
    %285 = vmatpush.msra.mxu0 %v88
    %286 = vmatpush.msra.mxu0 %v85
    %287 = vmatpush.msra.mxu0 %v82
    %288 = vmatpush.msra.mxu0 %v79
    %289 = vmatpush.msra.mxu0 %v76
    %290 = vmatpush.msra.mxu0 %v73
    %291 = vmatpush.msra.mxu0 %v70
    %292 = vmatpush.msra.mxu0 %v67
    %293 = vmatpush.msra.mxu0 %v64
    %294 = vmatpush.msra.mxu0 %v61
    %295 = vmatmul.f32.gmra.mxu0 %v231
    %v296 = vpop.f32.mrf.mxu0
    %v297 = vadd.f32 0.0, %v296
    %298 = vdwg.mxu0
    %v299 = vadd.f32 %v236, %v257
    %v300 = vxor.u32 %v299, 2147483648
    %v301 = vmul.f32 %v300, 1.442695
    %v302 = vpow.pop %v301
    %v303 = vadd.f32 %v302, 1.0
    %v304 = vrcp.pop %v303
    %v305 = vmul.f32 %v303, %v304
    %v306 = vsub.f32 1.0, %v305
    %v307 = vmul.f32 %v304, %v306
    %v308 = vadd.f32 %v304, %v307
    %vm309 = vweird.f32 %v303
    %vm310 = vweird.f32 %v304
    %vm311 = vmor %vm309, %vm310
    %v312 = vsel %vm311, %v304, %v308
    %v313 = vand.u32 2147483647, %v303
    %vm314 = vcmp.eq.f32.partialorder %v313, 8.507059e+37
    %v315 = vand.u32 %v303, 2147483648
    %v316 = vor.u32 1.1754944e-38, %v315
    %v317 = vsel %vm314, %v316, %v312
    %v318 = vmul.f32 1.0, %v317
    %v319 = vadd.f32 %v237, %v277
    %v320 = vxor.u32 %v319, 2147483648
    %v321 = vmul.f32 %v320, 1.442695
    %v322 = vpow.pop %v321
    %v323 = vadd.f32 %v322, 1.0
    %v324 = vrcp.pop %v323
    %v325 = vmul.f32 %v323, %v324
    %v326 = vsub.f32 1.0, %v325
    %v327 = vmul.f32 %v324, %v326
    %v328 = vadd.f32 %v324, %v327
    %vm329 = vweird.f32 %v323
    %vm330 = vweird.f32 %v324
    %vm331 = vmor %vm329, %vm330
    %v332 = vsel %vm331, %v324, %v328
    %v333 = vand.u32 2147483647, %v323
    %vm334 = vcmp.eq.f32.partialorder %v333, 8.507059e+37
    %v335 = vand.u32 %v323, 2147483648
    %v336 = vor.u32 1.1754944e-38, %v335
    %v337 = vsel %vm334, %v336, %v332
    %v338 = vmul.f32 1.0, %v337
    %v339 = vadd.f32 %v297, %v214
    %v340 = vmul.f32 %v318, %v339
    %v341 = vadd.f32 %v238, %v340
    %v342 = vtanh.pop %v341
    %v343 = vsub.f32 1.0, %v338
    %v344 = vmul.f32 %v343, %v342
    %v345 = vmul.f32 %v338, %v231
    %v346 = vadd.f32 %v344, %v345
    %v347 = vstv %s234
    %vm348 = vcmp.gt.s32.totalorder %v58, %v347
    %v349 = vsel %vm348, 1, 0
    %350 = vset.pattern.permute.xlu0 0
    %351 = vperm.xlu0 %350, %v349
    %v352 = vpop.permute.xlu0 %351
    %vm353 = vcmp.eq.s32.totalorder %v352, 1
    %v354 = vsel %vm353, %v346, %v231
    %v355 = vsel %vm353, %v346, 0.0
    %s356 = scalar_lea.vmem [#allocation8], 8
    %357 = vst [vmem:[%s356] sm:$0xff] %v355
    %s358 = sadd.s32 %s109, 2
    %s359 = scalar_lea.vmem [#allocation3], 48
    %v360 = vld [vmem:[%s359] sm:$0xff]
    %v361 = vld [vmem:[%s359 + $0x8] sm:$0xff]
    %v362 = vld [vmem:[%s359 + $0x10] sm:$0xff]
    %363 = vmatpush.msra.mxu0 %v104
    %364 = vmatpush.msra.mxu0 %v101
    %365 = vmatpush.msra.mxu0 %v98
    %366 = vmatpush.msra.mxu0 %v95
    %367 = vmatpush.msra.mxu0 %v92
    %368 = vmatpush.msra.mxu0 %v89
    %369 = vmatpush.msra.mxu0 %v86
    %370 = vmatpush.msra.mxu0 %v83
    %371 = vmatpush.msra.mxu0 %v80
    %372 = vmatpush.msra.mxu0 %v77
    %373 = vmatpush.msra.mxu0 %v74
    %374 = vmatpush.msra.mxu0 %v71
    %375 = vmatpush.msra.mxu0 %v68
    %376 = vmatpush.msra.mxu0 %v65
    %377 = vmatpush.msra.mxu0 %v62
    %378 = vmatpush.msra.mxu0 %v59
    %379 = vmatmul.f32.gmra.mxu0 %v354
    %v380 = vpop.f32.mrf.mxu0
    %v381 = vadd.f32 0.0, %v380
    %382 = vdwg.mxu0
    %383 = vmatpush.msra.mxu0 %v105
    %384 = vmatpush.msra.mxu0 %v102
    %385 = vmatpush.msra.mxu0 %v99
    %386 = vmatpush.msra.mxu0 %v96
    %387 = vmatpush.msra.mxu0 %v93
    %388 = vmatpush.msra.mxu0 %v90
    %389 = vmatpush.msra.mxu0 %v87
    %390 = vmatpush.msra.mxu0 %v84
    %391 = vmatpush.msra.mxu0 %v81
    %392 = vmatpush.msra.mxu0 %v78
    %393 = vmatpush.msra.mxu0 %v75
    %394 = vmatpush.msra.mxu0 %v72
    %395 = vmatpush.msra.mxu0 %v69
    %396 = vmatpush.msra.mxu0 %v66
    %397 = vmatpush.msra.mxu0 %v63
    %398 = vmatpush.msra.mxu0 %v60
    %399 = vmatmul.f32.gmra.mxu0 %v354
    %v400 = vpop.f32.mrf.mxu0
    %v401 = vadd.f32 0.0, %v400
    %402 = vdwg.mxu0
    %403 = vmatpush.msra.mxu0 %v106
    %404 = vmatpush.msra.mxu0 %v103
    %405 = vmatpush.msra.mxu0 %v100
    %406 = vmatpush.msra.mxu0 %v97
    %407 = vmatpush.msra.mxu0 %v94
    %408 = vmatpush.msra.mxu0 %v91
    %409 = vmatpush.msra.mxu0 %v88
    %410 = vmatpush.msra.mxu0 %v85
    %411 = vmatpush.msra.mxu0 %v82
    %412 = vmatpush.msra.mxu0 %v79
    %413 = vmatpush.msra.mxu0 %v76
    %414 = vmatpush.msra.mxu0 %v73
    %415 = vmatpush.msra.mxu0 %v70
    %416 = vmatpush.msra.mxu0 %v67
    %417 = vmatpush.msra.mxu0 %v64
    %418 = vmatpush.msra.mxu0 %v61
    %419 = vmatmul.f32.gmra.mxu0 %v354
    %v420 = vpop.f32.mrf.mxu0
    %v421 = vadd.f32 0.0, %v420
    %422 = vdwg.mxu0
    %v423 = vadd.f32 %v360, %v381
    %v424 = vxor.u32 %v423, 2147483648
    %v425 = vmul.f32 %v424, 1.442695
    %v426 = vpow.pop %v425
    %v427 = vadd.f32 %v426, 1.0
    %v428 = vrcp.pop %v427
    %v429 = vmul.f32 %v427, %v428
    %v430 = vsub.f32 1.0, %v429
    %v431 = vmul.f32 %v428, %v430
    %v432 = vadd.f32 %v428, %v431
    %vm433 = vweird.f32 %v427
    %vm434 = vweird.f32 %v428
    %vm435 = vmor %vm433, %vm434
    %v436 = vsel %vm435, %v428, %v432
    %v437 = vand.u32 2147483647, %v427
    %vm438 = vcmp.eq.f32.partialorder %v437, 8.507059e+37
    %v439 = vand.u32 %v427, 2147483648
    %v440 = vor.u32 1.1754944e-38, %v439
    %v441 = vsel %vm438, %v440, %v436
    %v442 = vmul.f32 1.0, %v441
    %v443 = vadd.f32 %v361, %v401
    %v444 = vxor.u32 %v443, 2147483648
    %v445 = vmul.f32 %v444, 1.442695
    %v446 = vpow.pop %v445
    %v447 = vadd.f32 %v446, 1.0
    %v448 = vrcp.pop %v447
    %v449 = vmul.f32 %v447, %v448
    %v450 = vsub.f32 1.0, %v449
    %v451 = vmul.f32 %v448, %v450
    %v452 = vadd.f32 %v448, %v451
    %vm453 = vweird.f32 %v447
    %vm454 = vweird.f32 %v448
    %vm455 = vmor %vm453, %vm454
    %v456 = vsel %vm455, %v448, %v452
    %v457 = vand.u32 2147483647, %v447
    %vm458 = vcmp.eq.f32.partialorder %v457, 8.507059e+37
    %v459 = vand.u32 %v447, 2147483648
    %v460 = vor.u32 1.1754944e-38, %v459
    %v461 = vsel %vm458, %v460, %v456
    %v462 = vmul.f32 1.0, %v461
    %v463 = vadd.f32 %v421, %v214
    %v464 = vmul.f32 %v442, %v463
    %v465 = vadd.f32 %v362, %v464
    %v466 = vtanh.pop %v465
    %v467 = vsub.f32 1.0, %v462
    %v468 = vmul.f32 %v467, %v466
    %v469 = vmul.f32 %v462, %v354
    %v470 = vadd.f32 %v468, %v469
    %v471 = vstv %s358
    %vm472 = vcmp.gt.s32.totalorder %v58, %v471
    %v473 = vsel %vm472, 1, 0
    %474 = vset.pattern.permute.xlu0 0
    %475 = vperm.xlu0 %474, %v473
    %v476 = vpop.permute.xlu0 %475
    %vm477 = vcmp.eq.s32.totalorder %v476, 1
    %v478 = vsel %vm477, %v470, %v354
    %v479 = vsel %vm477, %v470, 0.0
    %s480 = scalar_lea.vmem [#allocation8], 16
    %481 = vst [vmem:[%s480] sm:$0xff] %v479
    %s482 = sadd.s32 %s109, 3
    %s483 = scalar_lea.vmem [#allocation3], 72
    %v484 = vld [vmem:[%s483] sm:$0xff]
    %v485 = vld [vmem:[%s483 + $0x8] sm:$0xff]
    %v486 = vld [vmem:[%s483 + $0x10] sm:$0xff]
    %487 = vmatpush.msra.mxu0 %v104
    %488 = vmatpush.msra.mxu0 %v101
    %489 = vmatpush.msra.mxu0 %v98
    %490 = vmatpush.msra.mxu0 %v95
    %491 = vmatpush.msra.mxu0 %v92
    %492 = vmatpush.msra.mxu0 %v89
    %493 = vmatpush.msra.mxu0 %v86
    %494 = vmatpush.msra.mxu0 %v83
    %495 = vmatpush.msra.mxu0 %v80
    %496 = vmatpush.msra.mxu0 %v77
    %497 = vmatpush.msra.mxu0 %v74
    %498 = vmatpush.msra.mxu0 %v71
    %499 = vmatpush.msra.mxu0 %v68
    %500 = vmatpush.msra.mxu0 %v65
    %501 = vmatpush.msra.mxu0 %v62
    %502 = vmatpush.msra.mxu0 %v59
    %503 = vmatmul.f32.gmra.mxu0 %v478
    %v504 = vpop.f32.mrf.mxu0
    %v505 = vadd.f32 0.0, %v504
    %506 = vdwg.mxu0
    %507 = vmatpush.msra.mxu0 %v105
    %508 = vmatpush.msra.mxu0 %v102
    %509 = vmatpush.msra.mxu0 %v99
    %510 = vmatpush.msra.mxu0 %v96
    %511 = vmatpush.msra.mxu0 %v93
    %512 = vmatpush.msra.mxu0 %v90
    %513 = vmatpush.msra.mxu0 %v87
    %514 = vmatpush.msra.mxu0 %v84
    %515 = vmatpush.msra.mxu0 %v81
    %516 = vmatpush.msra.mxu0 %v78
    %517 = vmatpush.msra.mxu0 %v75
    %518 = vmatpush.msra.mxu0 %v72
    %519 = vmatpush.msra.mxu0 %v69
    %520 = vmatpush.msra.mxu0 %v66
    %521 = vmatpush.msra.mxu0 %v63
    %522 = vmatpush.msra.mxu0 %v60
    %523 = vmatmul.f32.gmra.mxu0 %v478
    %v524 = vpop.f32.mrf.mxu0
    %v525 = vadd.f32 0.0, %v524
    %526 = vdwg.mxu0
    %527 = vmatpush.msra.mxu0 %v106
    %528 = vmatpush.msra.mxu0 %v103
    %529 = vmatpush.msra.mxu0 %v100
    %530 = vmatpush.msra.mxu0 %v97
    %531 = vmatpush.msra.mxu0 %v94
    %532 = vmatpush.msra.mxu0 %v91
    %533 = vmatpush.msra.mxu0 %v88
    %534 = vmatpush.msra.mxu0 %v85
    %535 = vmatpush.msra.mxu0 %v82
    %536 = vmatpush.msra.mxu0 %v79
    %537 = vmatpush.msra.mxu0 %v76
    %538 = vmatpush.msra.mxu0 %v73
    %539 = vmatpush.msra.mxu0 %v70
    %540 = vmatpush.msra.mxu0 %v67
    %541 = vmatpush.msra.mxu0 %v64
    %542 = vmatpush.msra.mxu0 %v61
    %543 = vmatmul.f32.gmra.mxu0 %v478
    %v544 = vpop.f32.mrf.mxu0
    %v545 = vadd.f32 0.0, %v544
    %546 = vdwg.mxu0
    %v547 = vadd.f32 %v484, %v505
    %v548 = vxor.u32 %v547, 2147483648
    %v549 = vmul.f32 %v548, 1.442695
    %v550 = vpow.pop %v549
    %v551 = vadd.f32 %v550, 1.0
    %v552 = vrcp.pop %v551
    %v553 = vmul.f32 %v551, %v552
    %v554 = vsub.f32 1.0, %v553
    %v555 = vmul.f32 %v552, %v554
    %v556 = vadd.f32 %v552, %v555
    %vm557 = vweird.f32 %v551
    %vm558 = vweird.f32 %v552
    %vm559 = vmor %vm557, %vm558
    %v560 = vsel %vm559, %v552, %v556
    %v561 = vand.u32 2147483647, %v551
    %vm562 = vcmp.eq.f32.partialorder %v561, 8.507059e+37
    %v563 = vand.u32 %v551, 2147483648
    %v564 = vor.u32 1.1754944e-38, %v563
    %v565 = vsel %vm562, %v564, %v560
    %v566 = vmul.f32 1.0, %v565
    %v567 = vadd.f32 %v485, %v525
    %v568 = vxor.u32 %v567, 2147483648
    %v569 = vmul.f32 %v568, 1.442695
    %v570 = vpow.pop %v569
    %v571 = vadd.f32 %v570, 1.0
    %v572 = vrcp.pop %v571
    %v573 = vmul.f32 %v571, %v572
    %v574 = vsub.f32 1.0, %v573
    %v575 = vmul.f32 %v572, %v574
    %v576 = vadd.f32 %v572, %v575
    %vm577 = vweird.f32 %v571
    %vm578 = vweird.f32 %v572
    %vm579 = vmor %vm577, %vm578
    %v580 = vsel %vm579, %v572, %v576
    %v581 = vand.u32 2147483647, %v571
    %vm582 = vcmp.eq.f32.partialorder %v581, 8.507059e+37
    %v583 = vand.u32 %v571, 2147483648
    %v584 = vor.u32 1.1754944e-38, %v583
    %v585 = vsel %vm582, %v584, %v580
    %v586 = vmul.f32 1.0, %v585
    %v587 = vadd.f32 %v545, %v214
    %v588 = vmul.f32 %v566, %v587
    %v589 = vadd.f32 %v486, %v588
    %v590 = vtanh.pop %v589
    %v591 = vsub.f32 1.0, %v586
    %v592 = vmul.f32 %v591, %v590
    %v593 = vmul.f32 %v586, %v478
    %v594 = vadd.f32 %v592, %v593
    %v595 = vstv %s482
    %vm596 = vcmp.gt.s32.totalorder %v58, %v595
    %v597 = vsel %vm596, 1, 0
    %598 = vset.pattern.permute.xlu0 0
    %599 = vperm.xlu0 %598, %v597
    %v600 = vpop.permute.xlu0 %599
    %vm601 = vcmp.eq.s32.totalorder %v600, 1
    %v602 = vsel %vm601, %v594, %v478
    %v603 = vsel %vm601, %v594, 0.0
    %s604 = scalar_lea.vmem [#allocation8], 24
    %605 = vst [vmem:[%s604] sm:$0xff] %v603
    %s606 = sadd.s32 %s109, 4
    %s607 = scalar_lea.vmem [#allocation3], 96
    %v608 = vld [vmem:[%s607] sm:$0xff]
    %v609 = vld [vmem:[%s607 + $0x8] sm:$0xff]
    %v610 = vld [vmem:[%s607 + $0x10] sm:$0xff]
    %611 = vmatpush.msra.mxu0 %v104
    %612 = vmatpush.msra.mxu0 %v101
    %613 = vmatpush.msra.mxu0 %v98
    %614 = vmatpush.msra.mxu0 %v95
    %615 = vmatpush.msra.mxu0 %v92
    %616 = vmatpush.msra.mxu0 %v89
    %617 = vmatpush.msra.mxu0 %v86
    %618 = vmatpush.msra.mxu0 %v83
    %619 = vmatpush.msra.mxu0 %v80
    %620 = vmatpush.msra.mxu0 %v77
    %621 = vmatpush.msra.mxu0 %v74
    %622 = vmatpush.msra.mxu0 %v71
    %623 = vmatpush.msra.mxu0 %v68
    %624 = vmatpush.msra.mxu0 %v65
    %625 = vmatpush.msra.mxu0 %v62
    %626 = vmatpush.msra.mxu0 %v59
    %627 = vmatmul.f32.gmra.mxu0 %v602
    %v628 = vpop.f32.mrf.mxu0
    %v629 = vadd.f32 0.0, %v628
    %630 = vdwg.mxu0
    %631 = vmatpush.msra.mxu0 %v105
    %632 = vmatpush.msra.mxu0 %v102
    %633 = vmatpush.msra.mxu0 %v99
    %634 = vmatpush.msra.mxu0 %v96
    %635 = vmatpush.msra.mxu0 %v93
    %636 = vmatpush.msra.mxu0 %v90
    %637 = vmatpush.msra.mxu0 %v87
    %638 = vmatpush.msra.mxu0 %v84
    %639 = vmatpush.msra.mxu0 %v81
    %640 = vmatpush.msra.mxu0 %v78
    %641 = vmatpush.msra.mxu0 %v75
    %642 = vmatpush.msra.mxu0 %v72
    %643 = vmatpush.msra.mxu0 %v69
    %644 = vmatpush.msra.mxu0 %v66
    %645 = vmatpush.msra.mxu0 %v63
    %646 = vmatpush.msra.mxu0 %v60
    %647 = vmatmul.f32.gmra.mxu0 %v602
    %v648 = vpop.f32.mrf.mxu0
    %v649 = vadd.f32 0.0, %v648
    %650 = vdwg.mxu0
    %651 = vmatpush.msra.mxu0 %v106
    %652 = vmatpush.msra.mxu0 %v103
    %653 = vmatpush.msra.mxu0 %v100
    %654 = vmatpush.msra.mxu0 %v97
    %655 = vmatpush.msra.mxu0 %v94
    %656 = vmatpush.msra.mxu0 %v91
    %657 = vmatpush.msra.mxu0 %v88
    %658 = vmatpush.msra.mxu0 %v85
    %659 = vmatpush.msra.mxu0 %v82
    %660 = vmatpush.msra.mxu0 %v79
    %661 = vmatpush.msra.mxu0 %v76
    %662 = vmatpush.msra.mxu0 %v73
    %663 = vmatpush.msra.mxu0 %v70
    %664 = vmatpush.msra.mxu0 %v67
    %665 = vmatpush.msra.mxu0 %v64
    %666 = vmatpush.msra.mxu0 %v61
    %667 = vmatmul.f32.gmra.mxu0 %v602
    %v668 = vpop.f32.mrf.mxu0
    %v669 = vadd.f32 0.0, %v668
    %670 = vdwg.mxu0
    %v671 = vadd.f32 %v608, %v629
    %v672 = vxor.u32 %v671, 2147483648
    %v673 = vmul.f32 %v672, 1.442695
    %v674 = vpow.pop %v673
    %v675 = vadd.f32 %v674, 1.0
    %v676 = vrcp.pop %v675
    %v677 = vmul.f32 %v675, %v676
    %v678 = vsub.f32 1.0, %v677
    %v679 = vmul.f32 %v676, %v678
    %v680 = vadd.f32 %v676, %v679
    %vm681 = vweird.f32 %v675
    %vm682 = vweird.f32 %v676
    %vm683 = vmor %vm681, %vm682
    %v684 = vsel %vm683, %v676, %v680
    %v685 = vand.u32 2147483647, %v675
    %vm686 = vcmp.eq.f32.partialorder %v685, 8.507059e+37
    %v687 = vand.u32 %v675, 2147483648
    %v688 = vor.u32 1.1754944e-38, %v687
    %v689 = vsel %vm686, %v688, %v684
    %v690 = vmul.f32 1.0, %v689
    %v691 = vadd.f32 %v609, %v649
    %v692 = vxor.u32 %v691, 2147483648
    %v693 = vmul.f32 %v692, 1.442695
    %v694 = vpow.pop %v693
    %v695 = vadd.f32 %v694, 1.0
    %v696 = vrcp.pop %v695
    %v697 = vmul.f32 %v695, %v696
    %v698 = vsub.f32 1.0, %v697
    %v699 = vmul.f32 %v696, %v698
    %v700 = vadd.f32 %v696, %v699
    %vm701 = vweird.f32 %v695
    %vm702 = vweird.f32 %v696
    %vm703 = vmor %vm701, %vm702
    %v704 = vsel %vm703, %v696, %v700
    %v705 = vand.u32 2147483647, %v695
    %vm706 = vcmp.eq.f32.partialorder %v705, 8.507059e+37
    %v707 = vand.u32 %v695, 2147483648
    %v708 = vor.u32 1.1754944e-38, %v707
    %v709 = vsel %vm706, %v708, %v704
    %v710 = vmul.f32 1.0, %v709
    %v711 = vadd.f32 %v669, %v214
    %v712 = vmul.f32 %v690, %v711
    %v713 = vadd.f32 %v610, %v712
    %v714 = vtanh.pop %v713
    %v715 = vsub.f32 1.0, %v710
    %v716 = vmul.f32 %v715, %v714
    %v717 = vmul.f32 %v710, %v602
    %v718 = vadd.f32 %v716, %v717
    %v719 = vstv %s606
    %vm720 = vcmp.gt.s32.totalorder %v58, %v719
    %v721 = vsel %vm720, 1, 0
    %722 = vset.pattern.permute.xlu0 0
    %723 = vperm.xlu0 %722, %v721
    %v724 = vpop.permute.xlu0 %723
    %vm725 = vcmp.eq.s32.totalorder %v724, 1
    %v726 = vsel %vm725, %v718, %v602
    %v727 = vsel %vm725, %v718, 0.0
    %s728 = scalar_lea.vmem [#allocation8], 32
    %729 = vst [vmem:[%s728] sm:$0xff] %v727
    %s730 = sadd.s32 %s109, 5
    %s731 = scalar_lea.vmem [#allocation3], 120
    %v732 = vld [vmem:[%s731] sm:$0xff]
    %v733 = vld [vmem:[%s731 + $0x8] sm:$0xff]
    %v734 = vld [vmem:[%s731 + $0x10] sm:$0xff]
    %735 = vmatpush.msra.mxu0 %v104
    %736 = vmatpush.msra.mxu0 %v101
    %737 = vmatpush.msra.mxu0 %v98
    %738 = vmatpush.msra.mxu0 %v95
    %739 = vmatpush.msra.mxu0 %v92
    %740 = vmatpush.msra.mxu0 %v89
    %741 = vmatpush.msra.mxu0 %v86
    %742 = vmatpush.msra.mxu0 %v83
    %743 = vmatpush.msra.mxu0 %v80
    %744 = vmatpush.msra.mxu0 %v77
    %745 = vmatpush.msra.mxu0 %v74
    %746 = vmatpush.msra.mxu0 %v71
    %747 = vmatpush.msra.mxu0 %v68
    %748 = vmatpush.msra.mxu0 %v65
    %749 = vmatpush.msra.mxu0 %v62
    %750 = vmatpush.msra.mxu0 %v59
    %751 = vmatmul.f32.gmra.mxu0 %v726
    %v752 = vpop.f32.mrf.mxu0
    %v753 = vadd.f32 0.0, %v752
    %754 = vdwg.mxu0
    %755 = vmatpush.msra.mxu0 %v105
    %756 = vmatpush.msra.mxu0 %v102
    %757 = vmatpush.msra.mxu0 %v99
    %758 = vmatpush.msra.mxu0 %v96
    %759 = vmatpush.msra.mxu0 %v93
    %760 = vmatpush.msra.mxu0 %v90
    %761 = vmatpush.msra.mxu0 %v87
    %762 = vmatpush.msra.mxu0 %v84
    %763 = vmatpush.msra.mxu0 %v81
    %764 = vmatpush.msra.mxu0 %v78
    %765 = vmatpush.msra.mxu0 %v75
    %766 = vmatpush.msra.mxu0 %v72
    %767 = vmatpush.msra.mxu0 %v69
    %768 = vmatpush.msra.mxu0 %v66
    %769 = vmatpush.msra.mxu0 %v63
    %770 = vmatpush.msra.mxu0 %v60
    %771 = vmatmul.f32.gmra.mxu0 %v726
    %v772 = vpop.f32.mrf.mxu0
    %v773 = vadd.f32 0.0, %v772
    %774 = vdwg.mxu0
    %775 = vmatpush.msra.mxu0 %v106
    %776 = vmatpush.msra.mxu0 %v103
    %777 = vmatpush.msra.mxu0 %v100
    %778 = vmatpush.msra.mxu0 %v97
    %779 = vmatpush.msra.mxu0 %v94
    %780 = vmatpush.msra.mxu0 %v91
    %781 = vmatpush.msra.mxu0 %v88
    %782 = vmatpush.msra.mxu0 %v85
    %783 = vmatpush.msra.mxu0 %v82
    %784 = vmatpush.msra.mxu0 %v79
    %785 = vmatpush.msra.mxu0 %v76
    %786 = vmatpush.msra.mxu0 %v73
    %787 = vmatpush.msra.mxu0 %v70
    %788 = vmatpush.msra.mxu0 %v67
    %789 = vmatpush.msra.mxu0 %v64
    %790 = vmatpush.msra.mxu0 %v61
    %791 = vmatmul.f32.gmra.mxu0 %v726
    %v792 = vpop.f32.mrf.mxu0
    %v793 = vadd.f32 0.0, %v792
    %794 = vdwg.mxu0
    %v795 = vadd.f32 %v732, %v753
    %v796 = vxor.u32 %v795, 2147483648
    %v797 = vmul.f32 %v796, 1.442695
    %v798 = vpow.pop %v797
    %v799 = vadd.f32 %v798, 1.0
    %v800 = vrcp.pop %v799
    %v801 = vmul.f32 %v799, %v800
    %v802 = vsub.f32 1.0, %v801
    %v803 = vmul.f32 %v800, %v802
    %v804 = vadd.f32 %v800, %v803
    %vm805 = vweird.f32 %v799
    %vm806 = vweird.f32 %v800
    %vm807 = vmor %vm805, %vm806
    %v808 = vsel %vm807, %v800, %v804
    %v809 = vand.u32 2147483647, %v799
    %vm810 = vcmp.eq.f32.partialorder %v809, 8.507059e+37
    %v811 = vand.u32 %v799, 2147483648
    %v812 = vor.u32 1.1754944e-38, %v811
    %v813 = vsel %vm810, %v812, %v808
    %v814 = vmul.f32 1.0, %v813
    %v815 = vadd.f32 %v733, %v773
    %v816 = vxor.u32 %v815, 2147483648
    %v817 = vmul.f32 %v816, 1.442695
    %v818 = vpow.pop %v817
    %v819 = vadd.f32 %v818, 1.0
    %v820 = vrcp.pop %v819
    %v821 = vmul.f32 %v819, %v820
    %v822 = vsub.f32 1.0, %v821
    %v823 = vmul.f32 %v820, %v822
    %v824 = vadd.f32 %v820, %v823
    %vm825 = vweird.f32 %v819
    %vm826 = vweird.f32 %v820
    %vm827 = vmor %vm825, %vm826
    %v828 = vsel %vm827, %v820, %v824
    %v829 = vand.u32 2147483647, %v819
    %vm830 = vcmp.eq.f32.partialorder %v829, 8.507059e+37
    %v831 = vand.u32 %v819, 2147483648
    %v832 = vor.u32 1.1754944e-38, %v831
    %v833 = vsel %vm830, %v832, %v828
    %v834 = vmul.f32 1.0, %v833
    %v835 = vadd.f32 %v793, %v214
    %v836 = vmul.f32 %v814, %v835
    %v837 = vadd.f32 %v734, %v836
    %v838 = vtanh.pop %v837
    %v839 = vsub.f32 1.0, %v834
    %v840 = vmul.f32 %v839, %v838
    %v841 = vmul.f32 %v834, %v726
    %v842 = vadd.f32 %v840, %v841
    %v843 = vstv %s730
    %vm844 = vcmp.gt.s32.totalorder %v58, %v843
    %v845 = vsel %vm844, 1, 0
    %846 = vset.pattern.permute.xlu0 0
    %847 = vperm.xlu0 %846, %v845
    %v848 = vpop.permute.xlu0 %847
    %vm849 = vcmp.eq.s32.totalorder %v848, 1
    %v850 = vsel %vm849, %v842, %v726
    %v851 = vsel %vm849, %v842, 0.0
    %s852 = scalar_lea.vmem [#allocation8], 40
    %853 = vst [vmem:[%s852] sm:$0xff] %v851
    %s854 = sadd.s32 %s109, 6
    %s855 = scalar_lea.vmem [#allocation3], 144
    %v856 = vld [vmem:[%s855] sm:$0xff]
    %v857 = vld [vmem:[%s855 + $0x8] sm:$0xff]
    %v858 = vld [vmem:[%s855 + $0x10] sm:$0xff]
    %859 = vmatpush.msra.mxu0 %v104
    %860 = vmatpush.msra.mxu0 %v101
    %861 = vmatpush.msra.mxu0 %v98
    %862 = vmatpush.msra.mxu0 %v95
    %863 = vmatpush.msra.mxu0 %v92
    %864 = vmatpush.msra.mxu0 %v89
    %865 = vmatpush.msra.mxu0 %v86
    %866 = vmatpush.msra.mxu0 %v83
    %867 = vmatpush.msra.mxu0 %v80
    %868 = vmatpush.msra.mxu0 %v77
    %869 = vmatpush.msra.mxu0 %v74
    %870 = vmatpush.msra.mxu0 %v71
    %871 = vmatpush.msra.mxu0 %v68
    %872 = vmatpush.msra.mxu0 %v65
    %873 = vmatpush.msra.mxu0 %v62
    %874 = vmatpush.msra.mxu0 %v59
    %875 = vmatmul.f32.gmra.mxu0 %v850
    %v876 = vpop.f32.mrf.mxu0
    %v877 = vadd.f32 0.0, %v876
    %878 = vdwg.mxu0
    %879 = vmatpush.msra.mxu0 %v105
    %880 = vmatpush.msra.mxu0 %v102
    %881 = vmatpush.msra.mxu0 %v99
    %882 = vmatpush.msra.mxu0 %v96
    %883 = vmatpush.msra.mxu0 %v93
    %884 = vmatpush.msra.mxu0 %v90
    %885 = vmatpush.msra.mxu0 %v87
    %886 = vmatpush.msra.mxu0 %v84
    %887 = vmatpush.msra.mxu0 %v81
    %888 = vmatpush.msra.mxu0 %v78
    %889 = vmatpush.msra.mxu0 %v75
    %890 = vmatpush.msra.mxu0 %v72
    %891 = vmatpush.msra.mxu0 %v69
    %892 = vmatpush.msra.mxu0 %v66
    %893 = vmatpush.msra.mxu0 %v63
    %894 = vmatpush.msra.mxu0 %v60
    %895 = vmatmul.f32.gmra.mxu0 %v850
    %v896 = vpop.f32.mrf.mxu0
    %v897 = vadd.f32 0.0, %v896
    %898 = vdwg.mxu0
    %899 = vmatpush.msra.mxu0 %v106
    %900 = vmatpush.msra.mxu0 %v103
    %901 = vmatpush.msra.mxu0 %v100
    %902 = vmatpush.msra.mxu0 %v97
    %903 = vmatpush.msra.mxu0 %v94
    %904 = vmatpush.msra.mxu0 %v91
    %905 = vmatpush.msra.mxu0 %v88
    %906 = vmatpush.msra.mxu0 %v85
    %907 = vmatpush.msra.mxu0 %v82
    %908 = vmatpush.msra.mxu0 %v79
    %909 = vmatpush.msra.mxu0 %v76
    %910 = vmatpush.msra.mxu0 %v73
    %911 = vmatpush.msra.mxu0 %v70
    %912 = vmatpush.msra.mxu0 %v67
    %913 = vmatpush.msra.mxu0 %v64
    %914 = vmatpush.msra.mxu0 %v61
    %915 = vmatmul.f32.gmra.mxu0 %v850
    %v916 = vpop.f32.mrf.mxu0
    %v917 = vadd.f32 0.0, %v916
    %918 = vdwg.mxu0
    %v919 = vadd.f32 %v856, %v877
    %v920 = vxor.u32 %v919, 2147483648
    %v921 = vmul.f32 %v920, 1.442695
    %v922 = vpow.pop %v921
    %v923 = vadd.f32 %v922, 1.0
    %v924 = vrcp.pop %v923
    %v925 = vmul.f32 %v923, %v924
    %v926 = vsub.f32 1.0, %v925
    %v927 = vmul.f32 %v924, %v926
    %v928 = vadd.f32 %v924, %v927
    %vm929 = vweird.f32 %v923
    %vm930 = vweird.f32 %v924
    %vm931 = vmor %vm929, %vm930
    %v932 = vsel %vm931, %v924, %v928
    %v933 = vand.u32 2147483647, %v923
    %vm934 = vcmp.eq.f32.partialorder %v933, 8.507059e+37
    %v935 = vand.u32 %v923, 2147483648
    %v936 = vor.u32 1.1754944e-38, %v935
    %v937 = vsel %vm934, %v936, %v932
    %v938 = vmul.f32 1.0, %v937
    %v939 = vadd.f32 %v857, %v897
    %v940 = vxor.u32 %v939, 2147483648
    %v941 = vmul.f32 %v940, 1.442695
    %v942 = vpow.pop %v941
    %v943 = vadd.f32 %v942, 1.0
    %v944 = vrcp.pop %v943
    %v945 = vmul.f32 %v943, %v944
    %v946 = vsub.f32 1.0, %v945
    %v947 = vmul.f32 %v944, %v946
    %v948 = vadd.f32 %v944, %v947
    %vm949 = vweird.f32 %v943
    %vm950 = vweird.f32 %v944
    %vm951 = vmor %vm949, %vm950
    %v952 = vsel %vm951, %v944, %v948
    %v953 = vand.u32 2147483647, %v943
    %vm954 = vcmp.eq.f32.partialorder %v953, 8.507059e+37
    %v955 = vand.u32 %v943, 2147483648
    %v956 = vor.u32 1.1754944e-38, %v955
    %v957 = vsel %vm954, %v956, %v952
    %v958 = vmul.f32 1.0, %v957
    %v959 = vadd.f32 %v917, %v214
    %v960 = vmul.f32 %v938, %v959
    %v961 = vadd.f32 %v858, %v960
    %v962 = vtanh.pop %v961
    %v963 = vsub.f32 1.0, %v958
    %v964 = vmul.f32 %v963, %v962
    %v965 = vmul.f32 %v958, %v850
    %v966 = vadd.f32 %v964, %v965
    %v967 = vstv %s854
    %vm968 = vcmp.gt.s32.totalorder %v58, %v967
    %v969 = vsel %vm968, 1, 0
    %970 = vset.pattern.permute.xlu0 0
    %971 = vperm.xlu0 %970, %v969
    %v972 = vpop.permute.xlu0 %971
    %vm973 = vcmp.eq.s32.totalorder %v972, 1
    %v974 = vsel %vm973, %v966, %v850
    %v975 = vsel %vm973, %v966, 0.0
    %s976 = scalar_lea.vmem [#allocation8], 48
    %977 = vst [vmem:[%s976] sm:$0xff] %v975
    %s978 = sadd.s32 %s109, 7
    %s979 = scalar_lea.vmem [#allocation3], 168
    %v980 = vld [vmem:[%s979] sm:$0xff]
    %v981 = vld [vmem:[%s979 + $0x8] sm:$0xff]
    %v982 = vld [vmem:[%s979 + $0x10] sm:$0xff]
    %983 = vmatpush.msra.mxu0 %v104
    %984 = vmatpush.msra.mxu0 %v101
    %985 = vmatpush.msra.mxu0 %v98
    %986 = vmatpush.msra.mxu0 %v95
    %987 = vmatpush.msra.mxu0 %v92
    %988 = vmatpush.msra.mxu0 %v89
    %989 = vmatpush.msra.mxu0 %v86
    %990 = vmatpush.msra.mxu0 %v83
    %991 = vmatpush.msra.mxu0 %v80
    %992 = vmatpush.msra.mxu0 %v77
    %993 = vmatpush.msra.mxu0 %v74
    %994 = vmatpush.msra.mxu0 %v71
    %995 = vmatpush.msra.mxu0 %v68
    %996 = vmatpush.msra.mxu0 %v65
    %997 = vmatpush.msra.mxu0 %v62
    %998 = vmatpush.msra.mxu0 %v59
    %999 = vmatmul.f32.gmra.mxu0 %v974
    %v1000 = vpop.f32.mrf.mxu0
    %v1001 = vadd.f32 0.0, %v1000
    %1002 = vdwg.mxu0
    %1003 = vmatpush.msra.mxu0 %v105
    %1004 = vmatpush.msra.mxu0 %v102
    %1005 = vmatpush.msra.mxu0 %v99
    %1006 = vmatpush.msra.mxu0 %v96
    %1007 = vmatpush.msra.mxu0 %v93
    %1008 = vmatpush.msra.mxu0 %v90
    %1009 = vmatpush.msra.mxu0 %v87
    %1010 = vmatpush.msra.mxu0 %v84
    %1011 = vmatpush.msra.mxu0 %v81
    %1012 = vmatpush.msra.mxu0 %v78
    %1013 = vmatpush.msra.mxu0 %v75
    %1014 = vmatpush.msra.mxu0 %v72
    %1015 = vmatpush.msra.mxu0 %v69
    %1016 = vmatpush.msra.mxu0 %v66
    %1017 = vmatpush.msra.mxu0 %v63
    %1018 = vmatpush.msra.mxu0 %v60
    %1019 = vmatmul.f32.gmra.mxu0 %v974
    %v1020 = vpop.f32.mrf.mxu0
    %v1021 = vadd.f32 0.0, %v1020
    %1022 = vdwg.mxu0
    %1023 = vmatpush.msra.mxu0 %v106
    %1024 = vmatpush.msra.mxu0 %v103
    %1025 = vmatpush.msra.mxu0 %v100
    %1026 = vmatpush.msra.mxu0 %v97
    %1027 = vmatpush.msra.mxu0 %v94
    %1028 = vmatpush.msra.mxu0 %v91
    %1029 = vmatpush.msra.mxu0 %v88
    %1030 = vmatpush.msra.mxu0 %v85
    %1031 = vmatpush.msra.mxu0 %v82
    %1032 = vmatpush.msra.mxu0 %v79
    %1033 = vmatpush.msra.mxu0 %v76
    %1034 = vmatpush.msra.mxu0 %v73
    %1035 = vmatpush.msra.mxu0 %v70
    %1036 = vmatpush.msra.mxu0 %v67
    %1037 = vmatpush.msra.mxu0 %v64
    %1038 = vmatpush.msra.mxu0 %v61
    %1039 = vmatmul.f32.gmra.mxu0 %v974
    %v1040 = vpop.f32.mrf.mxu0
    %v1041 = vadd.f32 0.0, %v1040
    %1042 = vdwg.mxu0
    %v1043 = vadd.f32 %v980, %v1001
    %v1044 = vxor.u32 %v1043, 2147483648
    %v1045 = vmul.f32 %v1044, 1.442695
    %v1046 = vpow.pop %v1045
    %v1047 = vadd.f32 %v1046, 1.0
    %v1048 = vrcp.pop %v1047
    %v1049 = vmul.f32 %v1047, %v1048
    %v1050 = vsub.f32 1.0, %v1049
    %v1051 = vmul.f32 %v1048, %v1050
    %v1052 = vadd.f32 %v1048, %v1051
    %vm1053 = vweird.f32 %v1047
    %vm1054 = vweird.f32 %v1048
    %vm1055 = vmor %vm1053, %vm1054
    %v1056 = vsel %vm1055, %v1048, %v1052
    %v1057 = vand.u32 2147483647, %v1047
    %vm1058 = vcmp.eq.f32.partialorder %v1057, 8.507059e+37
    %v1059 = vand.u32 %v1047, 2147483648
    %v1060 = vor.u32 1.1754944e-38, %v1059
    %v1061 = vsel %vm1058, %v1060, %v1056
    %v1062 = vmul.f32 1.0, %v1061
    %v1063 = vadd.f32 %v981, %v1021
    %v1064 = vxor.u32 %v1063, 2147483648
    %v1065 = vmul.f32 %v1064, 1.442695
    %v1066 = vpow.pop %v1065
    %v1067 = vadd.f32 %v1066, 1.0
    %v1068 = vrcp.pop %v1067
    %v1069 = vmul.f32 %v1067, %v1068
    %v1070 = vsub.f32 1.0, %v1069
    %v1071 = vmul.f32 %v1068, %v1070
    %v1072 = vadd.f32 %v1068, %v1071
    %vm1073 = vweird.f32 %v1067
    %vm1074 = vweird.f32 %v1068
    %vm1075 = vmor %vm1073, %vm1074
    %v1076 = vsel %vm1075, %v1068, %v1072
    %v1077 = vand.u32 2147483647, %v1067
    %vm1078 = vcmp.eq.f32.partialorder %v1077, 8.507059e+37
    %v1079 = vand.u32 %v1067, 2147483648
    %v1080 = vor.u32 1.1754944e-38, %v1079
    %v1081 = vsel %vm1078, %v1080, %v1076
    %v1082 = vmul.f32 1.0, %v1081
    %v1083 = vadd.f32 %v1041, %v214
    %v1084 = vmul.f32 %v1062, %v1083
    %v1085 = vadd.f32 %v982, %v1084
    %v1086 = vtanh.pop %v1085
    %v1087 = vsub.f32 1.0, %v1082
    %v1088 = vmul.f32 %v1087, %v1086
    %v1089 = vmul.f32 %v1082, %v974
    %v1090 = vadd.f32 %v1088, %v1089
    %v1091 = vstv %s978
    %vm1092 = vcmp.gt.s32.totalorder %v58, %v1091
    %v1093 = vsel %vm1092, 1, 0
    %1094 = vset.pattern.permute.xlu0 0
    %1095 = vperm.xlu0 %1094, %v1093
    %v1096 = vpop.permute.xlu0 %1095
    %vm1097 = vcmp.eq.s32.totalorder %v1096, 1
    %v1098 = vsel %vm1097, %v1090, %v974
    %v1099 = vsel %vm1097, %v1090, 0.0
    %s1100 = scalar_lea.vmem [#allocation8], 56
    %1101 = vst [vmem:[%s1100] sm:$0xff] %v1099
    %1102 = vst [vmem:[#allocation2] sm:$0xff] %v1098
    // Predicated region
    $region30: #{tpu_custom_call.1} parent=1 // pred_check
      %p1103 = pneg %p53
    $region31: #{tpu_custom_call.1} parent=1 // pred_check_branch
      %1105 = sbr.rel (%p1103) target = $region33
    $region32: #{tpu_custom_call.1} parent=1 // pred_region
      %v1106 = vld [vmem:[#allocation2] sm:$0xff]
      %1107 = vst [vmem:[#allocation9] sm:$0xff] %v1106
    $region33: #{tpu_custom_call.1} parent=1 // pred_fallthru
      _
    // Predicated region
    $region34: #{tpu_custom_call.1} parent=1 // pred_check
      _
    $region35: #{tpu_custom_call.1} parent=1 // pred_check_branch
      %1109 = sbr.rel (0) target = $region37
    $region36: #{tpu_custom_call.1} parent=1 // pred_region
      %1111 = vsyncadd [#allocation5], 0
      %s1112 = sshll.u32 [#allocation8], 4
      %s1113 = int_to_ptr.vmem [resolvable:$true] %s1112
      %s1114 = sshll.u32 %s4, 4
      %s1115 = int_to_ptr.hbm [resolvable:$true] %s1114
      %1120 = dma.vmem_to_hbm [thread:$0]  %s1113, 1024, %s1115, [#allocation5], 128, 128, 8
    $region37: #{tpu_custom_call.1} parent=1 // pred_fallthru
      _
    // Predicated region
    $region38: #{tpu_custom_call.1} parent=1 // pred_check
      _
    $region39: #{tpu_custom_call.1} parent=1 // pred_check_branch
      %1122 = sbr.rel (0) target = $region41
    $region40: #{tpu_custom_call.1} parent=1 // pred_region
      %1124 = vsyncadd [#allocation10], 0
      %s1126 = sshll.u32 [#allocation9], 4
      %s1127 = int_to_ptr.vmem [resolvable:$true] %s1126
      %s1128 = sshll.u32 %s5, 4
      %s1129 = int_to_ptr.hbm [resolvable:$true] %s1128
      %1131 = dma.vmem_to_hbm [thread:$0]  %s1127, 128, %s1129, [#allocation10]
    $region41: #{tpu_custom_call.1} parent=1 // pred_fallthru
      _
    // Predicated region
    $region42: #{tpu_custom_call.1} parent=1 // pred_check
      _
    $region43: #{tpu_custom_call.1} parent=1 // pred_check_branch
      %1133 = sbr.rel (0) target = $region45
    $region44: #{tpu_custom_call.1} parent=1 // pred_region
      %1135 = dma.done [#allocation5], 1024
    $region45: #{tpu_custom_call.1} parent=1 // pred_fallthru
      _
    // Predicated region
    $region46: #{tpu_custom_call.1} parent=1 // pred_check
      _
    $region47: #{tpu_custom_call.1} parent=1 // pred_check_branch
      %1137 = sbr.rel (0) target = $region49
    $region48: #{tpu_custom_call.1} parent=1 // pred_region
      %1139 = dma.done [#allocation10], 128
    $region49: #{tpu_custom_call.1} parent=1 // pred_fallthru
      _
    %1140 = vsyncpa [#allocation4], 1
    %1141 = vsyncpa [#allocation7], 1
    %1142 = vsyncpa [#allocation5], 1
    %1143 = vsyncpa [#allocation10], 1

</llo_original>
